<compile_context>
chip_gen: v7x
topology: tpu7x:2x2x1
jax: 0.10.0
libtpu: 0.0.40
codegen_flags: <defaults>
</compile_context>

<pallas_src>
import functools

import jax
import jax.numpy as jnp
from jax import lax
from jax.experimental import pallas as pl
from jax.experimental.pallas import tpu as pltpu


# ------------------------------ fused kernel --------------------------------


def _bottleneck_kernel(x_ref, xt_ref, xb_ref, w1_ref, w2_ref, w3_ref,
                       s1_ref, b1_ref, s2_ref, b2_ref, s3_ref, b3_ref,
                       o_ref, mid_ref, *, Ht, W, d):
    """Fused bottleneck on one (Ht, W) row strip of one batch element (NHWC)."""
    i = pl.program_id(1)           # row-strip index
    nb = pl.num_programs(1)

    w1 = w1_ref[...]
    s1 = s1_ref[0]
    b1 = b1_ref[0]

    def stage1(x):                 # 1x1 conv + BN + ReLU (channels on lanes)
        y = jnp.einsum("hwc,cd->hwd", x, w1,
                       preferred_element_type=jnp.float32)
        return jnp.maximum(y * s1 + b1, 0.0).astype(mid_ref.dtype)

    # Zeroing the padded stage-1 scratch *is* conv2's zero padding: left/right
    # columns always, top/bottom halo rows whenever this strip touches the
    # image border (the pl.when writes below are skipped there).
    mid_ref[...] = jnp.zeros_like(mid_ref)

    # Stage 1 on this strip's own rows.
    mid_ref[d:d + Ht, d:d + W, :] = stage1(x_ref[0])

    # Stage 1 on the d halo rows above / below the strip.
    @pl.when(i > 0)
    def _():
        mid_ref[0:d, d:d + W, :] = stage1(xt_ref[0])

    @pl.when(i < nb - 1)
    def _():
        mid_ref[d + Ht:2 * d + Ht, d:d + W, :] = stage1(xb_ref[0])

    # Stage 2: dilated 3x3 conv as ONE wide MXU matmul (im2col over the 9 taps,
    # contraction K = 9*Cmid), fused BN + ReLU.
    taps = [mid_ref[ky * d:ky * d + Ht, kx * d:kx * d + W, :]
            for ky in range(3) for kx in range(3)]
    col = jnp.concatenate(taps, axis=-1)                    # (Ht, W, 9*Cmid)
    y2 = jnp.einsum("hwk,kc->hwc", col, w2_ref[...],
                    preferred_element_type=jnp.float32)
    y2 = jnp.maximum(y2 * s2_ref[0] + b2_ref[0], 0.0).astype(w3_ref.dtype)

    # Stage 3: 1x1 conv + BN + ReLU, then residual add AFTER the ReLU
    # (matches the module: out = conv3(out); out = out + identity).
    y3 = jnp.einsum("hwc,cd->hwd", y2, w3_ref[...],
                    preferred_element_type=jnp.float32)
    y3 = jnp.maximum(y3 * s3_ref[0] + b3_ref[0], 0.0)
    o_ref[0] = (y3 + x_ref[0].astype(jnp.float32)).astype(o_ref.dtype)


# -------------------------------- wrapper ------------------------------------


def _fold_bn(conv_bias, gamma, beta, mean, var, eps=1e-5):
    scale = gamma / jnp.sqrt(var + eps)
    bias = (conv_bias - mean) * scale + beta
    return scale, bias


def _pick_row_tile(H, d, target=8):
    # Largest divisor of H that is a multiple of d and <= target.  For real
    # ResNet-scale shapes this should be re-derived from VMEM capacity
    # (per-generation: 128 MiB on v5e/v6e, 64 MiB on v7x) so that the
    # double-buffered x/out tiles plus the padded mid scratch fit comfortably.
    cand = [t for t in range(1, H + 1)
            if H % t == 0 and t % d == 0 and t <= target]
    return max(cand) if cand else H


def bottleneck_forward(x_nchw, p, dilation=1, *, compute_dtype=jnp.float32,
                       row_tile=None):
    d = int(dilation)
    # NCHW -> NHWC so channels sit on the 128-lane axis.  Boundary transposes
    # are kept outside the kernel; everything in between is one fused call.
    x = jnp.transpose(x_nchw, (0, 2, 3, 1))
    N, H, W, Cin = x.shape
    Cmid = p["w1"].shape[1]

    s1, b1 = _fold_bn(p["b1"], p["g1"], p["be1"], p["m1"], p["v1"])
    s2, b2 = _fold_bn(p["b2"], p["g2"], p["be2"], p["m2"], p["v2"])
    s3, b3 = _fold_bn(p["b3"], p["g3"], p["be3"], p["m3"], p["v3"])

    xc = x.astype(compute_dtype)
    w1 = p["w1"].astype(compute_dtype)                          # (Cin, Cmid)
    w2 = p["w2"].reshape(9 * Cmid, Cmid).astype(compute_dtype)  # (ky,kx,cin) raveled
    w3 = p["w3"].astype(compute_dtype)                          # (Cmid, Cin)

    Ht = row_tile if row_tile is not None else _pick_row_tile(H, d)
    assert H % Ht == 0 and Ht % d == 0, (H, Ht, d)
    nb = H // Ht
    hd = Ht // d                   # strip height in units of d-row halo blocks
    n_dblk = max(H // d, 1)

    kern = functools.partial(_bottleneck_kernel, Ht=Ht, W=W, d=d)
    out = pl.pallas_call(
        kern,
        out_shape=jax.ShapeDtypeStruct((N, H, W, Cin), x.dtype),
        grid=(N, nb),
        in_specs=[
            # row strip of x (also reused for the residual, no second HBM read)
            pl.BlockSpec((1, Ht, W, Cin), lambda n, i: (n, i, 0, 0)),
            # d rows above / below the strip (clamped; masked at image edges)
            pl.BlockSpec((1, d, W, Cin),
                         lambda n, i: (n, jnp.maximum(i * hd - 1, 0), 0, 0)),
            pl.BlockSpec((1, d, W, Cin),
                         lambda n, i: (n, jnp.minimum((i + 1) * hd, n_dblk - 1), 0, 0)),
            pl.BlockSpec((Cin, Cmid), lambda n, i: (0, 0)),
            pl.BlockSpec((9 * Cmid, Cmid), lambda n, i: (0, 0)),
            pl.BlockSpec((Cmid, Cin), lambda n, i: (0, 0)),
            pl.BlockSpec((1, Cmid), lambda n, i: (0, 0)),   # s1
            pl.BlockSpec((1, Cmid), lambda n, i: (0, 0)),   # b1
            pl.BlockSpec((1, Cmid), lambda n, i: (0, 0)),   # s2
            pl.BlockSpec((1, Cmid), lambda n, i: (0, 0)),   # b2
            pl.BlockSpec((1, Cin), lambda n, i: (0, 0)),    # s3
            pl.BlockSpec((1, Cin), lambda n, i: (0, 0)),    # b3
        ],
        out_specs=pl.BlockSpec((1, Ht, W, Cin), lambda n, i: (n, i, 0, 0)),
        scratch_shapes=[
            pltpu.VMEM((Ht + 2 * d, W + 2 * d, Cmid), compute_dtype)],
        compiler_params=pltpu.CompilerParams(
            dimension_semantics=("parallel", "parallel")),
    )(xc, xc, xc, w1, w2, w3,
      s1.reshape(1, Cmid), b1.reshape(1, Cmid),
      s2.reshape(1, Cmid), b2.reshape(1, Cmid),
      s3.reshape(1, Cin), b3.reshape(1, Cin))
    return jnp.transpose(out, (0, 3, 1, 2))    # NHWC -> NCHW


# --------------------------- pure-JAX reference ------------------------------


def bottleneck_ref(x_nchw, p, dilation=1):
    x = jnp.transpose(x_nchw, (0, 2, 3, 1))
    dn = ("NHWC", "HWIO", "NHWC")

    def bn_relu(y, conv_b, g, be, m, v):
        s, b = _fold_bn(conv_b, g, be, m, v)
        return jnp.maximum(y * s + b, 0.0)

    o = lax.conv_general_dilated(x, p["w1"][None, None], (1, 1), "VALID",
                                 dimension_numbers=dn)
    o = bn_relu(o, p["b1"], p["g1"], p["be1"], p["m1"], p["v1"])
    o = lax.conv_general_dilated(o, p["w2"], (1, 1),
                                 [(dilation, dilation), (dilation, dilation)],
                                 rhs_dilation=(dilation, dilation),
                                 dimension_numbers=dn)
    o = bn_relu(o, p["b2"], p["g2"], p["be2"], p["m2"], p["v2"])
    o = lax.conv_general_dilated(o, p["w3"][None, None], (1, 1), "VALID",
                                 dimension_numbers=dn)
    o = bn_relu(o, p["b3"], p["g3"], p["be3"], p["m3"], p["v3"])
    o = o + x
    return jnp.transpose(o, (0, 3, 1, 2))


# ------------------------------- params / main --------------------------------


def make_params(key, in_channels, mid_channels):
    ks = jax.random.split(key, 16)
    f32 = jnp.float32

    def bn(k, c):
        a, b, c_, d_ = jax.random.split(k, 4)
        return dict(
            g=1.0 + 0.1 * jax.random.normal(a, (c,), f32),
            be=0.1 * jax.random.normal(b, (c,), f32),
            m=0.1 * jax.random.normal(c_, (c,), f32),
            v=0.5 + 0.1 * jnp.abs(jax.random.normal(d_, (c,), f32)),
        )

    bn1 = bn(ks[3], mid_channels)
    bn2 = bn(ks[4], mid_channels)
    bn3 = bn(ks[5], in_channels)
    return {
        # 1x1 convs stored as (Cin, Cout); 3x3 conv stored HWIO.
        "w1": 0.1 * jax.random.normal(ks[0], (in_channels, mid_channels), f32),
        "b1": 0.05 * jax.random.normal(ks[6], (mid_channels,), f32),
        "w2": 0.1 * jax.random.normal(ks[1], (3, 3, mid_channels, mid_channels), f32),
        "b2": 0.05 * jax.random.normal(ks[7], (mid_channels,), f32),
        "w3": 0.1 * jax.random.normal(ks[2], (mid_channels, in_channels), f32),
        "b3": 0.05 * jax.random.normal(ks[8], (in_channels,), f32),
        "g1": bn1["g"], "be1": bn1["be"], "m1": bn1["m"], "v1": bn1["v"],
        "g2": bn2["g"], "be2": bn2["be"], "m2": bn2["m"], "v2": bn2["v"],
        "g3": bn3["g"], "be3": bn3["be"], "m3": bn3["m"], "v3": bn3["v"],
    }


if __name__ == "__main__":
    N, Cin, Cmid, H, W = 2, 32, 8, 16, 16
    key = jax.random.PRNGKey(0)
    kx, kp = jax.random.split(key)
    x = jax.random.normal(kx, (N, Cin, H, W), jnp.float32)   # NCHW like PyTorch
    params = make_params(kp, Cin, Cmid)

    # f32 path (tight tolerance) for dilation 1 and 2.
    for dil in (1, 2):
        ref = jax.block_until_ready(bottleneck_ref(x, params, dil))
        out = jax.block_until_ready(
            bottleneck_forward(x, params, dil, compute_dtype=jnp.float32))
        assert out.shape == (N, Cin, H, W)
        err = float(jnp.max(jnp.abs(out - ref)))
        assert jnp.allclose(out, ref, rtol=5e-3, atol=5e-3), ("f32", dil, err)

    # bf16 storage/compute with f32 accumulation (looser tolerance vs f32 ref).
    ref = jax.block_until_ready(bottleneck_ref(x, params, 1))
    out_bf16 = jax.block_until_ready(
        bottleneck_forward(x, params, 1, compute_dtype=jnp.bfloat16))
    err = float(jnp.max(jnp.abs(out_bf16 - ref)))
    assert jnp.allclose(out_bf16, ref, rtol=1e-1, atol=1e-1), ("bf16", err)

    print("KERNEL_OK")
</pallas_src>

<mosaic_0001>
module attributes {stable_mosaic.version = 11 : i64} {
  func.func @_bottleneck_kernel(%arg0: i32, %arg1: i32, %arg2: memref<1x8x16x32xf32, #tpu.memory_space<vmem>>, %arg3: memref<1x1x16x32xf32, #tpu.memory_space<vmem>>, %arg4: memref<1x1x16x32xf32, #tpu.memory_space<vmem>>, %arg5: memref<32x8xf32, #tpu.memory_space<vmem>>, %arg6: memref<72x8xf32, #tpu.memory_space<vmem>>, %arg7: memref<8x32xf32, #tpu.memory_space<vmem>>, %arg8: memref<1x8xf32, #tpu.memory_space<vmem>>, %arg9: memref<1x8xf32, #tpu.memory_space<vmem>>, %arg10: memref<1x8xf32, #tpu.memory_space<vmem>>, %arg11: memref<1x8xf32, #tpu.memory_space<vmem>>, %arg12: memref<1x32xf32, #tpu.memory_space<vmem>>, %arg13: memref<1x32xf32, #tpu.memory_space<vmem>>, %arg14: memref<1x8x16x32xf32, #tpu.memory_space<vmem>>, %arg15: memref<10x18x8xf32, #tpu.memory_space<vmem>>) attributes {dimension_semantics = [#tpu.dimension_semantics<parallel>, #tpu.dimension_semantics<parallel>], iteration_bounds = array<i64: 2, 2>, scalar_prefetch = 0 : i64, scratch_operands = 1 : i64, tpu.core_type = #tpu.core_type<tc>, window_params = [{transform_indices = @transform_0, window_bounds = array<i64: 1, 8, 16, 32>}, {transform_indices = @transform_1, window_bounds = array<i64: 1, 1, 16, 32>}, {transform_indices = @transform_2, window_bounds = array<i64: 1, 1, 16, 32>}, {pipeline_mode = #tpu.pipeline_mode<synchronous>, transform_indices = @transform_3, window_bounds = array<i64: 32, 8>}, {pipeline_mode = #tpu.pipeline_mode<synchronous>, transform_indices = @transform_4, window_bounds = array<i64: 72, 8>}, {pipeline_mode = #tpu.pipeline_mode<synchronous>, transform_indices = @transform_5, window_bounds = array<i64: 8, 32>}, {pipeline_mode = #tpu.pipeline_mode<synchronous>, transform_indices = @transform_6, window_bounds = array<i64: 1, 8>}, {pipeline_mode = #tpu.pipeline_mode<synchronous>, transform_indices = @transform_7, window_bounds = array<i64: 1, 8>}, {pipeline_mode = #tpu.pipeline_mode<synchronous>, transform_indices = @transform_8, window_bounds = array<i64: 1, 8>}, {pipeline_mode = #tpu.pipeline_mode<synchronous>, transform_indices = @transform_9, window_bounds = array<i64: 1, 8>}, {pipeline_mode = #tpu.pipeline_mode<synchronous>, transform_indices = @transform_10, window_bounds = array<i64: 1, 32>}, {pipeline_mode = #tpu.pipeline_mode<synchronous>, transform_indices = @transform_11, window_bounds = array<i64: 1, 32>}, {transform_indices = @transform_12, window_bounds = array<i64: 1, 8, 16, 32>}]} {
    %c0 = arith.constant 0 : index
    %c0_0 = arith.constant 0 : index
    %0 = vector.load %arg5[%c0, %c0_0] : memref<32x8xf32, #tpu.memory_space<vmem>>, vector<32x8xf32>
    %c0_1 = arith.constant 0 : index
    %c0_2 = arith.constant 0 : index
    %1 = vector.load %arg8[%c0_1, %c0_2] : memref<1x8xf32, #tpu.memory_space<vmem>>, vector<1x8xf32>
    %2 = vector.shape_cast %1 : vector<1x8xf32> to vector<8xf32>
    %c0_3 = arith.constant 0 : index
    %c0_4 = arith.constant 0 : index
    %3 = vector.load %arg9[%c0_3, %c0_4] : memref<1x8xf32, #tpu.memory_space<vmem>>, vector<1x8xf32>
    %4 = vector.shape_cast %3 : vector<1x8xf32> to vector<8xf32>
    %cst = arith.constant 0.000000e+00 : f32
    %5 = vector.broadcast %cst : f32 to vector<10x18x8xf32>
    %c0_5 = arith.constant 0 : index
    %c0_6 = arith.constant 0 : index
    %c0_7 = arith.constant 0 : index
    %6 = vector.load %arg15[%c0_5, %c0_6, %c0_7] : memref<10x18x8xf32, #tpu.memory_space<vmem>>, vector<10x18x8xf32>
    tpu.vector_store %arg15[%c0_5, %c0_6, %c0_7], %5 {strides = array<i32>} : memref<10x18x8xf32, #tpu.memory_space<vmem>>, vector<10x18x8xf32>,
    %c0_8 = arith.constant 0 : index
    %c0_9 = arith.constant 0 : index
    %c0_10 = arith.constant 0 : index
    %c0_11 = arith.constant 0 : index
    %7 = vector.load %arg2[%c0_8, %c0_9, %c0_10, %c0_11] : memref<1x8x16x32xf32, #tpu.memory_space<vmem>>, vector<1x8x16x32xf32>
    %8 = vector.shape_cast %7 : vector<1x8x16x32xf32> to vector<8x16x32xf32>
    "tpu.trace_start"() <{level = 10 : i32, message = "hwc,cd->hwd"}> : () -> ()
    %cst_12 = arith.constant dense<0.000000e+00> : vector<8x16x8xf32>
    %9 = tpu.matmul %8, %0, %cst_12 {dimension_numbers = #tpu.dot_dimension_numbers<[2], [0], [0, 1], [1], [0, 0, 0, 1, 1, 1], [], []>} : vector<8x16x32xf32>, vector<32x8xf32>, vector<8x16x8xf32> -> vector<8x16x8xf32>
    "tpu.trace_stop"() : () -> ()
    %10 = vector.shape_cast %2 : vector<8xf32> to vector<1x1x8xf32>
    %11 = vector.broadcast %10 : vector<1x1x8xf32> to vector<8x16x8xf32>
    %12 = arith.mulf %9, %11 : vector<8x16x8xf32>
    %13 = vector.shape_cast %4 : vector<8xf32> to vector<1x1x8xf32>
    %14 = vector.broadcast %13 : vector<1x1x8xf32> to vector<8x16x8xf32>
    %15 = arith.addf %12, %14 : vector<8x16x8xf32>
    %cst_13 = arith.constant 0.000000e+00 : f32
    %16 = vector.broadcast %cst_13 : f32 to vector<8x16x8xf32>
    %17 = arith.maximumf %15, %16 : vector<8x16x8xf32>
    %c1 = arith.constant 1 : index
    %c1_14 = arith.constant 1 : index
    %c0_15 = arith.constant 0 : index
    %18 = vector.load %arg15[%c1, %c1_14, %c0_15] : memref<10x18x8xf32, #tpu.memory_space<vmem>>, vector<8x16x8xf32>
    tpu.vector_store %arg15[%c1, %c1_14, %c0_15], %17 {strides = array<i32>} : memref<10x18x8xf32, #tpu.memory_space<vmem>>, vector<8x16x8xf32>,
    %c0_i32 = arith.constant 0 : i32
    %19 = arith.cmpi sgt, %arg1, %c0_i32 : i32
    %20 = arith.extui %19 : i1 to i32
    %c0_i32_16 = arith.constant 0 : i32
    %21 = arith.cmpi ne, %20, %c0_i32_16 : i32
    scf.if %21 {
      %c0_68 = arith.constant 0 : index
      %c0_69 = arith.constant 0 : index
      %c0_70 = arith.constant 0 : index
      %c0_71 = arith.constant 0 : index
      %69 = vector.load %arg3[%c0_68, %c0_69, %c0_70, %c0_71] : memref<1x1x16x32xf32, #tpu.memory_space<vmem>>, vector<1x1x16x32xf32>
      %70 = vector.shape_cast %69 : vector<1x1x16x32xf32> to vector<1x16x32xf32>
      "tpu.trace_start"() <{level = 10 : i32, message = "hwc,cd->hwd"}> : () -> ()
      %cst_72 = arith.constant dense<0.000000e+00> : vector<1x16x8xf32>
      %71 = tpu.matmul %70, %0, %cst_72 {dimension_numbers = #tpu.dot_dimension_numbers<[2], [0], [0, 1], [1], [0, 0, 0, 1, 1, 1], [], []>} : vector<1x16x32xf32>, vector<32x8xf32>, vector<1x16x8xf32> -> vector<1x16x8xf32>
      "tpu.trace_stop"() : () -> ()
      %72 = vector.shape_cast %2 : vector<8xf32> to vector<1x1x8xf32>
      %73 = vector.broadcast %72 : vector<1x1x8xf32> to vector<1x16x8xf32>
      %74 = arith.mulf %71, %73 : vector<1x16x8xf32>
      %75 = vector.shape_cast %4 : vector<8xf32> to vector<1x1x8xf32>
      %76 = vector.broadcast %75 : vector<1x1x8xf32> to vector<1x16x8xf32>
      %77 = arith.addf %74, %76 : vector<1x16x8xf32>
      %cst_73 = arith.constant 0.000000e+00 : f32
      %78 = vector.broadcast %cst_73 : f32 to vector<1x16x8xf32>
      %79 = arith.maximumf %77, %78 : vector<1x16x8xf32>
      %c0_74 = arith.constant 0 : index
      %c1_75 = arith.constant 1 : index
      %c0_76 = arith.constant 0 : index
      %80 = vector.load %arg15[%c0_74, %c1_75, %c0_76] : memref<10x18x8xf32, #tpu.memory_space<vmem>>, vector<1x16x8xf32>
      tpu.vector_store %arg15[%c0_74, %c1_75, %c0_76], %79 {strides = array<i32>} : memref<10x18x8xf32, #tpu.memory_space<vmem>>, vector<1x16x8xf32>,
    } else {
    }
    %c1_i32 = arith.constant 1 : i32
    %22 = arith.cmpi slt, %arg1, %c1_i32 : i32
    %23 = arith.extui %22 : i1 to i32
    %c0_i32_17 = arith.constant 0 : i32
    %24 = arith.cmpi ne, %23, %c0_i32_17 : i32
    scf.if %24 {
      %c0_68 = arith.constant 0 : index
      %c0_69 = arith.constant 0 : index
      %c0_70 = arith.constant 0 : index
      %c0_71 = arith.constant 0 : index
      %69 = vector.load %arg4[%c0_68, %c0_69, %c0_70, %c0_71] : memref<1x1x16x32xf32, #tpu.memory_space<vmem>>, vector<1x1x16x32xf32>
      %70 = vector.shape_cast %69 : vector<1x1x16x32xf32> to vector<1x16x32xf32>
      "tpu.trace_start"() <{level = 10 : i32, message = "hwc,cd->hwd"}> : () -> ()
      %cst_72 = arith.constant dense<0.000000e+00> : vector<1x16x8xf32>
      %71 = tpu.matmul %70, %0, %cst_72 {dimension_numbers = #tpu.dot_dimension_numbers<[2], [0], [0, 1], [1], [0, 0, 0, 1, 1, 1], [], []>} : vector<1x16x32xf32>, vector<32x8xf32>, vector<1x16x8xf32> -> vector<1x16x8xf32>
      "tpu.trace_stop"() : () -> ()
      %72 = vector.shape_cast %2 : vector<8xf32> to vector<1x1x8xf32>
      %73 = vector.broadcast %72 : vector<1x1x8xf32> to vector<1x16x8xf32>
      %74 = arith.mulf %71, %73 : vector<1x16x8xf32>
      %75 = vector.shape_cast %4 : vector<8xf32> to vector<1x1x8xf32>
      %76 = vector.broadcast %75 : vector<1x1x8xf32> to vector<1x16x8xf32>
      %77 = arith.addf %74, %76 : vector<1x16x8xf32>
      %cst_73 = arith.constant 0.000000e+00 : f32
      %78 = vector.broadcast %cst_73 : f32 to vector<1x16x8xf32>
      %79 = arith.maximumf %77, %78 : vector<1x16x8xf32>
      %c9 = arith.constant 9 : index
      %c1_74 = arith.constant 1 : index
      %c0_75 = arith.constant 0 : index
      %80 = vector.load %arg15[%c9, %c1_74, %c0_75] : memref<10x18x8xf32, #tpu.memory_space<vmem>>, vector<1x16x8xf32>
      tpu.vector_store %arg15[%c9, %c1_74, %c0_75], %79 {strides = array<i32>} : memref<10x18x8xf32, #tpu.memory_space<vmem>>, vector<1x16x8xf32>,
    } else {
    }
    %c0_18 = arith.constant 0 : index
    %c0_19 = arith.constant 0 : index
    %c0_20 = arith.constant 0 : index
    %25 = vector.load %arg15[%c0_18, %c0_19, %c0_20] : memref<10x18x8xf32, #tpu.memory_space<vmem>>, vector<8x16x8xf32>
    %c0_21 = arith.constant 0 : index
    %c1_22 = arith.constant 1 : index
    %c0_23 = arith.constant 0 : index
    %26 = vector.load %arg15[%c0_21, %c1_22, %c0_23] : memref<10x18x8xf32, #tpu.memory_space<vmem>>, vector<8x16x8xf32>
    %c0_24 = arith.constant 0 : index
    %c2 = arith.constant 2 : index
    %c0_25 = arith.constant 0 : index
    %27 = vector.load %arg15[%c0_24, %c2, %c0_25] : memref<10x18x8xf32, #tpu.memory_space<vmem>>, vector<8x16x8xf32>
    %c1_26 = arith.constant 1 : index
    %c0_27 = arith.constant 0 : index
    %c0_28 = arith.constant 0 : index
    %28 = vector.load %arg15[%c1_26, %c0_27, %c0_28] : memref<10x18x8xf32, #tpu.memory_space<vmem>>, vector<8x16x8xf32>
    %c1_29 = arith.constant 1 : index
    %c1_30 = arith.constant 1 : index
    %c0_31 = arith.constant 0 : index
    %29 = vector.load %arg15[%c1_29, %c1_30, %c0_31] : memref<10x18x8xf32, #tpu.memory_space<vmem>>, vector<8x16x8xf32>
    %c1_32 = arith.constant 1 : index
    %c2_33 = arith.constant 2 : index
    %c0_34 = arith.constant 0 : index
    %30 = vector.load %arg15[%c1_32, %c2_33, %c0_34] : memref<10x18x8xf32, #tpu.memory_space<vmem>>, vector<8x16x8xf32>
    %c2_35 = arith.constant 2 : index
    %c0_36 = arith.constant 0 : index
    %c0_37 = arith.constant 0 : index
    %31 = vector.load %arg15[%c2_35, %c0_36, %c0_37] : memref<10x18x8xf32, #tpu.memory_space<vmem>>, vector<8x16x8xf32>
    %c2_38 = arith.constant 2 : index
    %c1_39 = arith.constant 1 : index
    %c0_40 = arith.constant 0 : index
    %32 = vector.load %arg15[%c2_38, %c1_39, %c0_40] : memref<10x18x8xf32, #tpu.memory_space<vmem>>, vector<8x16x8xf32>
    %c2_41 = arith.constant 2 : index
    %c2_42 = arith.constant 2 : index
    %c0_43 = arith.constant 0 : index
    %33 = vector.load %arg15[%c2_41, %c2_42, %c0_43] : memref<10x18x8xf32, #tpu.memory_space<vmem>>, vector<8x16x8xf32>
    %34 = tpu.concatenate %25, %26, %27, %28, %29, %30, %31, %32, %33 in 2 : vector<8x16x8xf32>, vector<8x16x8xf32>, vector<8x16x8xf32>, vector<8x16x8xf32>, vector<8x16x8xf32>, vector<8x16x8xf32>, vector<8x16x8xf32>, vector<8x16x8xf32>, vector<8x16x8xf32> -> vector<8x16x72xf32>
    %c0_44 = arith.constant 0 : index
    %c0_45 = arith.constant 0 : index
    %35 = vector.load %arg6[%c0_44, %c0_45] : memref<72x8xf32, #tpu.memory_space<vmem>>, vector<72x8xf32>
    "tpu.trace_start"() <{level = 10 : i32, message = "hwk,kc->hwc"}> : () -> ()
    %cst_46 = arith.constant dense<0.000000e+00> : vector<8x16x8xf32>
    %36 = tpu.matmul %34, %35, %cst_46 {dimension_numbers = #tpu.dot_dimension_numbers<[2], [0], [0, 1], [1], [0, 0, 0, 1, 1, 1], [], []>} : vector<8x16x72xf32>, vector<72x8xf32>, vector<8x16x8xf32> -> vector<8x16x8xf32>
    "tpu.trace_stop"() : () -> ()
    %c0_47 = arith.constant 0 : index
    %c0_48 = arith.constant 0 : index
    %37 = vector.load %arg10[%c0_47, %c0_48] : memref<1x8xf32, #tpu.memory_space<vmem>>, vector<1x8xf32>
    %38 = vector.shape_cast %37 : vector<1x8xf32> to vector<8xf32>
    %39 = vector.shape_cast %38 : vector<8xf32> to vector<1x1x8xf32>
    %40 = vector.broadcast %39 : vector<1x1x8xf32> to vector<8x16x8xf32>
    %41 = arith.mulf %36, %40 : vector<8x16x8xf32>
    %c0_49 = arith.constant 0 : index
    %c0_50 = arith.constant 0 : index
    %42 = vector.load %arg11[%c0_49, %c0_50] : memref<1x8xf32, #tpu.memory_space<vmem>>, vector<1x8xf32>
    %43 = vector.shape_cast %42 : vector<1x8xf32> to vector<8xf32>
    %44 = vector.shape_cast %43 : vector<8xf32> to vector<1x1x8xf32>
    %45 = vector.broadcast %44 : vector<1x1x8xf32> to vector<8x16x8xf32>
    %46 = arith.addf %41, %45 : vector<8x16x8xf32>
    %cst_51 = arith.constant 0.000000e+00 : f32
    %47 = vector.broadcast %cst_51 : f32 to vector<8x16x8xf32>
    %48 = arith.maximumf %46, %47 : vector<8x16x8xf32>
    %c0_52 = arith.constant 0 : index
    %c0_53 = arith.constant 0 : index
    %49 = vector.load %arg7[%c0_52, %c0_53] : memref<8x32xf32, #tpu.memory_space<vmem>>, vector<8x32xf32>
    "tpu.trace_start"() <{level = 10 : i32, message = "hwc,cd->hwd"}> : () -> ()
    %cst_54 = arith.constant dense<0.000000e+00> : vector<8x16x32xf32>
    %50 = tpu.matmul %48, %49, %cst_54 {dimension_numbers = #tpu.dot_dimension_numbers<[2], [0], [0, 1], [1], [0, 0, 0, 1, 1, 1], [], []>} : vector<8x16x8xf32>, vector<8x32xf32>, vector<8x16x32xf32> -> vector<8x16x32xf32>
    "tpu.trace_stop"() : () -> ()
    %c0_55 = arith.constant 0 : index
    %c0_56 = arith.constant 0 : index
    %51 = vector.load %arg12[%c0_55, %c0_56] : memref<1x32xf32, #tpu.memory_space<vmem>>, vector<1x32xf32>
    %52 = vector.shape_cast %51 : vector<1x32xf32> to vector<32xf32>
    %53 = vector.shape_cast %52 : vector<32xf32> to vector<1x1x32xf32>
    %54 = vector.broadcast %53 : vector<1x1x32xf32> to vector<8x16x32xf32>
    %55 = arith.mulf %50, %54 : vector<8x16x32xf32>
    %c0_57 = arith.constant 0 : index
    %c0_58 = arith.constant 0 : index
    %56 = vector.load %arg13[%c0_57, %c0_58] : memref<1x32xf32, #tpu.memory_space<vmem>>, vector<1x32xf32>
    %57 = vector.shape_cast %56 : vector<1x32xf32> to vector<32xf32>
    %58 = vector.shape_cast %57 : vector<32xf32> to vector<1x1x32xf32>
    %59 = vector.broadcast %58 : vector<1x1x32xf32> to vector<8x16x32xf32>
    %60 = arith.addf %55, %59 : vector<8x16x32xf32>
    %cst_59 = arith.constant 0.000000e+00 : f32
    %61 = vector.broadcast %cst_59 : f32 to vector<8x16x32xf32>
    %62 = arith.maximumf %60, %61 : vector<8x16x32xf32>
    %c0_60 = arith.constant 0 : index
    %c0_61 = arith.constant 0 : index
    %c0_62 = arith.constant 0 : index
    %c0_63 = arith.constant 0 : index
    %63 = vector.load %arg2[%c0_60, %c0_61, %c0_62, %c0_63] : memref<1x8x16x32xf32, #tpu.memory_space<vmem>>, vector<1x8x16x32xf32>
    %64 = vector.shape_cast %63 : vector<1x8x16x32xf32> to vector<8x16x32xf32>
    %65 = arith.addf %62, %64 : vector<8x16x32xf32>
    %c0_64 = arith.constant 0 : index
    %c0_65 = arith.constant 0 : index
    %c0_66 = arith.constant 0 : index
    %c0_67 = arith.constant 0 : index
    %66 = vector.load %arg14[%c0_64, %c0_65, %c0_66, %c0_67] : memref<1x8x16x32xf32, #tpu.memory_space<vmem>>, vector<1x8x16x32xf32>
    %67 = vector.shape_cast %66 : vector<1x8x16x32xf32> to vector<8x16x32xf32>
    %68 = vector.shape_cast %65 : vector<8x16x32xf32> to vector<1x8x16x32xf32>
    tpu.vector_store %arg14[%c0_64, %c0_65, %c0_66, %c0_67], %68 {strides = array<i32>} : memref<1x8x16x32xf32, #tpu.memory_space<vmem>>, vector<1x8x16x32xf32>,
    return
  }
  func.func @transform_0(%arg0: i32, %arg1: i32) -> (i32, i32, i32, i32) {
    %c0_i32 = arith.constant 0 : i32
    %c0_i32_0 = arith.constant 0 : i32
    %c0_i32_1 = arith.constant 0 : i32
    return %arg0, %arg1, %c0_i32, %c0_i32_0 : i32, i32, i32, i32
  }
  func.func @transform_1(%arg0: i32, %arg1: i32) -> (i32, i32, i32, i32) {
    %c8_i32 = arith.constant 8 : i32
    %0 = arith.muli %arg1, %c8_i32 : i32
    %c1_i32 = arith.constant 1 : i32
    %1 = arith.subi %0, %c1_i32 : i32
    %c0_i32 = arith.constant 0 : i32
    %2 = arith.maxsi %1, %c0_i32 : i32
    %c0_i32_0 = arith.constant 0 : i32
    %c0_i32_1 = arith.constant 0 : i32
    %c0_i32_2 = arith.constant 0 : i32
    return %arg0, %2, %c0_i32_0, %c0_i32_1 : i32, i32, i32, i32
  }
  func.func @transform_2(%arg0: i32, %arg1: i32) -> (i32, i32, i32, i32) {
    %c1_i32 = arith.constant 1 : i32
    %0 = arith.addi %arg1, %c1_i32 : i32
    %c8_i32 = arith.constant 8 : i32
    %1 = arith.muli %0, %c8_i32 : i32
    %c15_i32 = arith.constant 15 : i32
    %2 = arith.minsi %1, %c15_i32 : i32
    %c0_i32 = arith.constant 0 : i32
    %c0_i32_0 = arith.constant 0 : i32
    %c0_i32_1 = arith.constant 0 : i32
    return %arg0, %2, %c0_i32, %c0_i32_0 : i32, i32, i32, i32
  }
  func.func @transform_3(%arg0: i32, %arg1: i32) -> (i32, i32) {
    %c0_i32 = arith.constant 0 : i32
    %c0_i32_0 = arith.constant 0 : i32
    %c0_i32_1 = arith.constant 0 : i32
    return %c0_i32, %c0_i32_0 : i32, i32
  }
  func.func @transform_4(%arg0: i32, %arg1: i32) -> (i32, i32) {
    %c0_i32 = arith.constant 0 : i32
    %c0_i32_0 = arith.constant 0 : i32
    %c0_i32_1 = arith.constant 0 : i32
    return %c0_i32, %c0_i32_0 : i32, i32
  }
  func.func @transform_5(%arg0: i32, %arg1: i32) -> (i32, i32) {
    %c0_i32 = arith.constant 0 : i32
    %c0_i32_0 = arith.constant 0 : i32
    %c0_i32_1 = arith.constant 0 : i32
    return %c0_i32, %c0_i32_0 : i32, i32
  }
  func.func @transform_6(%arg0: i32, %arg1: i32) -> (i32, i32) {
    %c0_i32 = arith.constant 0 : i32
    %c0_i32_0 = arith.constant 0 : i32
    %c0_i32_1 = arith.constant 0 : i32
    return %c0_i32, %c0_i32_0 : i32, i32
  }
  func.func @transform_7(%arg0: i32, %arg1: i32) -> (i32, i32) {
    %c0_i32 = arith.constant 0 : i32
    %c0_i32_0 = arith.constant 0 : i32
    %c0_i32_1 = arith.constant 0 : i32
    return %c0_i32, %c0_i32_0 : i32, i32
  }
  func.func @transform_8(%arg0: i32, %arg1: i32) -> (i32, i32) {
    %c0_i32 = arith.constant 0 : i32
    %c0_i32_0 = arith.constant 0 : i32
    %c0_i32_1 = arith.constant 0 : i32
    return %c0_i32, %c0_i32_0 : i32, i32
  }
  func.func @transform_9(%arg0: i32, %arg1: i32) -> (i32, i32) {
    %c0_i32 = arith.constant 0 : i32
    %c0_i32_0 = arith.constant 0 : i32
    %c0_i32_1 = arith.constant 0 : i32
    return %c0_i32, %c0_i32_0 : i32, i32
  }
  func.func @transform_10(%arg0: i32, %arg1: i32) -> (i32, i32) {
    %c0_i32 = arith.constant 0 : i32
    %c0_i32_0 = arith.constant 0 : i32
    %c0_i32_1 = arith.constant 0 : i32
    return %c0_i32, %c0_i32_0 : i32, i32
  }
  func.func @transform_11(%arg0: i32, %arg1: i32) -> (i32, i32) {
    %c0_i32 = arith.constant 0 : i32
    %c0_i32_0 = arith.constant 0 : i32
    %c0_i32_1 = arith.constant 0 : i32
    return %c0_i32, %c0_i32_0 : i32, i32
  }
  func.func @transform_12(%arg0: i32, %arg1: i32) -> (i32, i32, i32, i32) {
    %c0_i32 = arith.constant 0 : i32
    %c0_i32_0 = arith.constant 0 : i32
    %c0_i32_1 = arith.constant 0 : i32
    return %arg0, %arg1, %c0_i32, %c0_i32_0 : i32, i32, i32, i32
  }
}

</mosaic_0001>

<llo_original>
// kernel: tpu_custom_call.1
$region0: #{tpu_custom_call.1}
  #allocation0 [shape = 'u32[]', space=smem, size = 0x4, offset = 0x4, fixed_abs, tag = 'smem constant byte address 0x4 - core index']
  #allocation1 [shape = 'u32[144,128]{1,0:T(1,128)}', space=vmem, size = 0x12000, scoped, tag = 'internal scratch']
  #allocation2 [shape = 'f32[10,18,8]{2,1,0:T(8,128)}', space=vmem, size = 0x1e000, scoped, tag = 'scratch operand']
  %s0 = inlined_call_operand.hbm [shape: f32[2,16,16,32], index: 0, kind: input, shape index: {}]
  %s1 = inlined_call_operand.hbm [shape: f32[2,16,16,32], index: 1, kind: input, shape index: {}]
  %s2 = inlined_call_operand.hbm [shape: f32[2,16,16,32], index: 2, kind: input, shape index: {}]
  %s3 = inlined_call_operand.vmem [shape: f32[32,8], index: 3, kind: input, shape index: {}]
  %s4 = inlined_call_operand.vmem [shape: f32[72,8], index: 4, kind: input, shape index: {}]
  %s5 = inlined_call_operand.vmem [shape: f32[8,32], index: 5, kind: input, shape index: {}]
  %s6 = inlined_call_operand.vmem [shape: f32[1,8], index: 6, kind: input, shape index: {}]
  %s7 = inlined_call_operand.vmem [shape: f32[1,8], index: 7, kind: input, shape index: {}]
  %s8 = inlined_call_operand.vmem [shape: f32[1,8], index: 8, kind: input, shape index: {}]
  %s9 = inlined_call_operand.vmem [shape: f32[1,8], index: 9, kind: input, shape index: {}]
  %s10 = inlined_call_operand.vmem [shape: f32[1,32], index: 10, kind: input, shape index: {}]
  %s11 = inlined_call_operand.vmem [shape: f32[1,32], index: 11, kind: input, shape index: {}]
  %s12 = inlined_call_operand.hbm [shape: f32[2,16,16,32], index: 12, kind: output, shape index: {}]
  %s13 = sld [smem:[#allocation0]]
  $region101: #{tpu_custom_call.1} parent=0
    _
  %s15 = ssub.s32 1, %s13
  %s16 = scalar_select 0, %s15, %s13
  $region1: #{tpu_custom_call.1} parent=0
    #allocation3 [shape = 'u8[131072]{0}', space=vmem, size = 0x20000, scoped, tag = 'input window, operand 0']
    #allocation4 [shape = 's32[2]{0}', space=sflag, size = 0x8, scoped, tag = 'scoped memory for tpu_custom_call.1']
    #allocation5 [shape = 's32[2]{0}', space=sflag, size = 0x8, scoped, tag = 'scoped memory for tpu_custom_call.1']
    #allocation6 [shape = 'u8[16384]{0}', space=vmem, size = 0x4000, scoped, tag = 'input window, operand 1']
    #allocation7 [shape = 's32[2]{0}', space=sflag, size = 0x8, scoped, tag = 'scoped memory for tpu_custom_call.1']
    #allocation8 [shape = 'u8[16384]{0}', space=vmem, size = 0x4000, scoped, tag = 'input window, operand 2']
    #allocation9 [shape = 'u8[131072]{0}', space=vmem, size = 0x20000, scoped, tag = 'output window, operand 0']
    %17 = vsyncpa [#allocation4], 0
    %s18 = scalar_lea.sflag [#allocation4], 1
    %19 = vsyncpa %s18, 0
    %20 = vsyncpa [#allocation7], 0
    %s21 = scalar_lea.sflag [#allocation7], 1
    %22 = vsyncpa %s21, 0
    %23 = vsyncpa [#allocation5], 0
    %s24 = scalar_lea.sflag [#allocation5], 1
    %25 = vsyncpa %s24, 0
    loop: start=0, step=1, limit=6
    $region2: #{tpu_custom_call.1} parent=1 // loop_pre_header
      _
    $region3: #{tpu_custom_call.1} parent=1 // loop_header
      %s27 = sphi 0, %s31
      %p28 = scmp.ge.s32.totalorder %s27, 6
      %s34 = sphi 0, %s46
      %s35 = sphi 0, %s42
      %s36 = sphi 0, %s34
      %s37 = sphi 0, %s35
      %s38 = sphi 0, %s36
      %s39 = sphi 0, %s37
      %s51 = sphi 0, %s53
      %s54 = sphi 0, %s51
      %s55 = sphi 0, %s54
      %s71 = sphi 0, %s55
      %s87 = sphi 0, %s89
      %s90 = sphi 0, %s87
      %s91 = sphi 0, %s90
      %s107 = sphi 0, %s91
      %s123 = sphi 0, %s125
      %s126 = sphi 0, %s123
      %s127 = sphi 0, %s126
      %s143 = sphi 0, %s127
      %s147 = sphi 0, %s147
      %s149 = sphi 0, %s147
      %s150 = sphi 0, %s149
      %s164 = sphi 0, %s150
      %s168 = sphi 0, %s168
      %s170 = sphi 0, %s168
      %s171 = sphi 0, %s170
      %s185 = sphi 0, %s171
      %s189 = sphi 0, %s189
      %s191 = sphi 0, %s189
      %s192 = sphi 0, %s191
      %s206 = sphi 0, %s192
      %s210 = sphi 0, %s210
      %s212 = sphi 0, %s210
      %s213 = sphi 0, %s212
      %s227 = sphi 0, %s213
      %s231 = sphi 0, %s231
      %s233 = sphi 0, %s231
      %s234 = sphi 0, %s233
      %s248 = sphi 0, %s234
      %s252 = sphi 0, %s252
      %s254 = sphi 0, %s252
      %s255 = sphi 0, %s254
      %s269 = sphi 0, %s255
      %s273 = sphi 0, %s273
      %s275 = sphi 0, %s273
      %s276 = sphi 0, %s275
      %s290 = sphi 0, %s276
      %s294 = sphi 0, %s294
      %s296 = sphi 0, %s294
      %s297 = sphi 0, %s296
      %s311 = sphi 0, %s297
      %s315 = sphi 0, %s315
      %s317 = sphi 0, %s315
      %s318 = sphi 0, %s317
      %s332 = sphi 0, %s318
      %s340 = sphi 0, %s342
      %s343 = sphi 0, %s340
      %s344 = sphi 0, %s343
      %s360 = sphi 0, %s344
    $region4: #{tpu_custom_call.1} parent=1 // loop_header_branch
      %30 = sbr.rel (%p28) target = $region8
    $region5: #{tpu_custom_call.1} parent=1 // loop_body
      %s32 = ssub.s32 %s27, 1
      %s33 = ssub.s32 %s27, 2
      %s40 = sadd.s32 1, %s35
      %p41 = scmp.ge.s32.totalorder %s40, 2
      %s42 = scalar_select %p41, 0, %s40
      %s43 = sadd.s32 1, %s34
      %s44 = scalar_select %p41, %s43, %s34
      %p45 = scmp.ge.s32.totalorder %s44, 2
      %s46 = scalar_select %p45, 0, %s44
      %s47 = ssub.s32 %s34, %s46
      %s48 = ssub.s32 %s35, %s42
      %s49 = sor.u32 %s47, %s48
      %p50 = scmp.eq.s32.totalorder %s49, 0
      %s52 = sadd.s32 %s51, 1
      %s53 = scalar_select %p50, %s51, %s52
      %p56 = pneg %p50
      %p57 = scmp.eq.s32.totalorder %s27, 3
      %p58 = por %p56, %p57
      %p59 = scmp.ne.s32.totalorder %s51, %s54
      %p60 = scmp.eq.s32.totalorder %s27, 0
      %p61 = por %p59, %p60
      %p62 = scmp.ne.s32.totalorder %s51, %s54
      %p63 = scmp.eq.s32.totalorder %s32, 3
      %p64 = por %p62, %p63
      %p65 = scmp.ne.s32.totalorder %s54, %s55
      %p66 = scmp.eq.s32.totalorder %s32, 0
      %p67 = por %p65, %p66
      %p68 = scmp.ne.s32.totalorder %s54, %s55
      %p69 = scmp.eq.s32.totalorder %s33, 3
      %p70 = por %p68, %p69
      %p72 = scmp.ne.s32.totalorder %s55, %s71
      %p73 = scmp.eq.s32.totalorder %s33, 0
      %p74 = por %p72, %p73
      %s75 = smul.u32 %s35, 8
      %s76 = ssub.s32 %s75, 1
      %p77 = scmp.gt.s32.totalorder %s76, 0
      %s78 = scalar_select %p77, %s76, 0
      %s79 = smul.u32 %s42, 8
      %s80 = ssub.s32 %s79, 1
      %p81 = scmp.gt.s32.totalorder %s80, 0
      %s82 = scalar_select %p81, %s80, 0
      %s83 = ssub.s32 %s34, %s46
      %s84 = ssub.s32 %s78, %s82
      %s85 = sor.u32 %s83, %s84
      %p86 = scmp.eq.s32.totalorder %s85, 0
      %s88 = sadd.s32 %s87, 1
      %s89 = scalar_select %p86, %s87, %s88
      %p92 = pneg %p86
      %p93 = scmp.eq.s32.totalorder %s27, 3
      %p94 = por %p92, %p93
      %p95 = scmp.ne.s32.totalorder %s87, %s90
      %p96 = scmp.eq.s32.totalorder %s27, 0
      %p97 = por %p95, %p96
      %p98 = scmp.ne.s32.totalorder %s87, %s90
      %p99 = scmp.eq.s32.totalorder %s32, 3
      %p100 = por %p98, %p99
      %p101 = scmp.ne.s32.totalorder %s90, %s91
      %p102 = scmp.eq.s32.totalorder %s32, 0
      %p103 = por %p101, %p102
      %p104 = scmp.ne.s32.totalorder %s90, %s91
      %p105 = scmp.eq.s32.totalorder %s33, 3
      %p106 = por %p104, %p105
      %p108 = scmp.ne.s32.totalorder %s91, %s107
      %p109 = scmp.eq.s32.totalorder %s33, 0
      %p110 = por %p108, %p109
      %s111 = sadd.s32 %s35, 1
      %s112 = smul.u32 %s111, 8
      %p113 = scmp.lt.s32.totalorder %s112, 15
      %s114 = scalar_select %p113, %s112, 15
      %s115 = sadd.s32 %s42, 1
      %s116 = smul.u32 %s115, 8
      %p117 = scmp.lt.s32.totalorder %s116, 15
      %s118 = scalar_select %p117, %s116, 15
      %s119 = ssub.s32 %s34, %s46
      %s120 = ssub.s32 %s114, %s118
      %s121 = sor.u32 %s119, %s120
      %p122 = scmp.eq.s32.totalorder %s121, 0
      %s124 = sadd.s32 %s123, 1
      %s125 = scalar_select %p122, %s123, %s124
      %p128 = pneg %p122
      %p129 = scmp.eq.s32.totalorder %s27, 3
      %p130 = por %p128, %p129
      %p131 = scmp.ne.s32.totalorder %s123, %s126
      %p132 = scmp.eq.s32.totalorder %s27, 0
      %p133 = por %p131, %p132
      %p134 = scmp.ne.s32.totalorder %s123, %s126
      %p135 = scmp.eq.s32.totalorder %s32, 3
      %p136 = por %p134, %p135
      %p137 = scmp.ne.s32.totalorder %s126, %s127
      %p138 = scmp.eq.s32.totalorder %s32, 0
      %p139 = por %p137, %p138
      %p140 = scmp.ne.s32.totalorder %s126, %s127
      %p141 = scmp.eq.s32.totalorder %s33, 3
      %p142 = por %p140, %p141
      %p144 = scmp.ne.s32.totalorder %s127, %s143
      %p145 = scmp.eq.s32.totalorder %s33, 0
      %p146 = por %p144, %p145
      %s148 = sadd.s32 %s147, 1
      %p151 = scmp.eq.s32.totalorder %s27, 3
      %p152 = scmp.ne.s32.totalorder %s147, %s149
      %p153 = scmp.eq.s32.totalorder %s27, 0
      %p154 = por %p152, %p153
      %p155 = scmp.ne.s32.totalorder %s147, %s149
      %p156 = scmp.eq.s32.totalorder %s32, 3
      %p157 = por %p155, %p156
      %p158 = scmp.ne.s32.totalorder %s149, %s150
      %p159 = scmp.eq.s32.totalorder %s32, 0
      %p160 = por %p158, %p159
      %p161 = scmp.ne.s32.totalorder %s149, %s150
      %p162 = scmp.eq.s32.totalorder %s33, 3
      %p163 = por %p161, %p162
      %p165 = scmp.ne.s32.totalorder %s150, %s164
      %p166 = scmp.eq.s32.totalorder %s33, 0
      %p167 = por %p165, %p166
      %s169 = sadd.s32 %s168, 1
      %p172 = scmp.eq.s32.totalorder %s27, 3
      %p173 = scmp.ne.s32.totalorder %s168, %s170
      %p174 = scmp.eq.s32.totalorder %s27, 0
      %p175 = por %p173, %p174
      %p176 = scmp.ne.s32.totalorder %s168, %s170
      %p177 = scmp.eq.s32.totalorder %s32, 3
      %p178 = por %p176, %p177
      %p179 = scmp.ne.s32.totalorder %s170, %s171
      %p180 = scmp.eq.s32.totalorder %s32, 0
      %p181 = por %p179, %p180
      %p182 = scmp.ne.s32.totalorder %s170, %s171
      %p183 = scmp.eq.s32.totalorder %s33, 3
      %p184 = por %p182, %p183
      %p186 = scmp.ne.s32.totalorder %s171, %s185
      %p187 = scmp.eq.s32.totalorder %s33, 0
      %p188 = por %p186, %p187
      %s190 = sadd.s32 %s189, 1
      %p193 = scmp.eq.s32.totalorder %s27, 3
      %p194 = scmp.ne.s32.totalorder %s189, %s191
      %p195 = scmp.eq.s32.totalorder %s27, 0
      %p196 = por %p194, %p195
      %p197 = scmp.ne.s32.totalorder %s189, %s191
      %p198 = scmp.eq.s32.totalorder %s32, 3
      %p199 = por %p197, %p198
      %p200 = scmp.ne.s32.totalorder %s191, %s192
      %p201 = scmp.eq.s32.totalorder %s32, 0
      %p202 = por %p200, %p201
      %p203 = scmp.ne.s32.totalorder %s191, %s192
      %p204 = scmp.eq.s32.totalorder %s33, 3
      %p205 = por %p203, %p204
      %p207 = scmp.ne.s32.totalorder %s192, %s206
      %p208 = scmp.eq.s32.totalorder %s33, 0
      %p209 = por %p207, %p208
      %s211 = sadd.s32 %s210, 1
      %p214 = scmp.eq.s32.totalorder %s27, 3
      %p215 = scmp.ne.s32.totalorder %s210, %s212
      %p216 = scmp.eq.s32.totalorder %s27, 0
      %p217 = por %p215, %p216
      %p218 = scmp.ne.s32.totalorder %s210, %s212
      %p219 = scmp.eq.s32.totalorder %s32, 3
      %p220 = por %p218, %p219
      %p221 = scmp.ne.s32.totalorder %s212, %s213
      %p222 = scmp.eq.s32.totalorder %s32, 0
      %p223 = por %p221, %p222
      %p224 = scmp.ne.s32.totalorder %s212, %s213
      %p225 = scmp.eq.s32.totalorder %s33, 3
      %p226 = por %p224, %p225
      %p228 = scmp.ne.s32.totalorder %s213, %s227
      %p229 = scmp.eq.s32.totalorder %s33, 0
      %p230 = por %p228, %p229
      %s232 = sadd.s32 %s231, 1
      %p235 = scmp.eq.s32.totalorder %s27, 3
      %p236 = scmp.ne.s32.totalorder %s231, %s233
      %p237 = scmp.eq.s32.totalorder %s27, 0
      %p238 = por %p236, %p237
      %p239 = scmp.ne.s32.totalorder %s231, %s233
      %p240 = scmp.eq.s32.totalorder %s32, 3
      %p241 = por %p239, %p240
      %p242 = scmp.ne.s32.totalorder %s233, %s234
      %p243 = scmp.eq.s32.totalorder %s32, 0
      %p244 = por %p242, %p243
      %p245 = scmp.ne.s32.totalorder %s233, %s234
      %p246 = scmp.eq.s32.totalorder %s33, 3
      %p247 = por %p245, %p246
      %p249 = scmp.ne.s32.totalorder %s234, %s248
      %p250 = scmp.eq.s32.totalorder %s33, 0
      %p251 = por %p249, %p250
      %s253 = sadd.s32 %s252, 1
      %p256 = scmp.eq.s32.totalorder %s27, 3
      %p257 = scmp.ne.s32.totalorder %s252, %s254
      %p258 = scmp.eq.s32.totalorder %s27, 0
      %p259 = por %p257, %p258
      %p260 = scmp.ne.s32.totalorder %s252, %s254
      %p261 = scmp.eq.s32.totalorder %s32, 3
      %p262 = por %p260, %p261
      %p263 = scmp.ne.s32.totalorder %s254, %s255
      %p264 = scmp.eq.s32.totalorder %s32, 0
      %p265 = por %p263, %p264
      %p266 = scmp.ne.s32.totalorder %s254, %s255
      %p267 = scmp.eq.s32.totalorder %s33, 3
      %p268 = por %p266, %p267
      %p270 = scmp.ne.s32.totalorder %s255, %s269
      %p271 = scmp.eq.s32.totalorder %s33, 0
      %p272 = por %p270, %p271
      %s274 = sadd.s32 %s273, 1
      %p277 = scmp.eq.s32.totalorder %s27, 3
      %p278 = scmp.ne.s32.totalorder %s273, %s275
      %p279 = scmp.eq.s32.totalorder %s27, 0
      %p280 = por %p278, %p279
      %p281 = scmp.ne.s32.totalorder %s273, %s275
      %p282 = scmp.eq.s32.totalorder %s32, 3
      %p283 = por %p281, %p282
      %p284 = scmp.ne.s32.totalorder %s275, %s276
      %p285 = scmp.eq.s32.totalorder %s32, 0
      %p286 = por %p284, %p285
      %p287 = scmp.ne.s32.totalorder %s275, %s276
      %p288 = scmp.eq.s32.totalorder %s33, 3
      %p289 = por %p287, %p288
      %p291 = scmp.ne.s32.totalorder %s276, %s290
      %p292 = scmp.eq.s32.totalorder %s33, 0
      %p293 = por %p291, %p292
      %s295 = sadd.s32 %s294, 1
      %p298 = scmp.eq.s32.totalorder %s27, 3
      %p299 = scmp.ne.s32.totalorder %s294, %s296
      %p300 = scmp.eq.s32.totalorder %s27, 0
      %p301 = por %p299, %p300
      %p302 = scmp.ne.s32.totalorder %s294, %s296
      %p303 = scmp.eq.s32.totalorder %s32, 3
      %p304 = por %p302, %p303
      %p305 = scmp.ne.s32.totalorder %s296, %s297
      %p306 = scmp.eq.s32.totalorder %s32, 0
      %p307 = por %p305, %p306
      %p308 = scmp.ne.s32.totalorder %s296, %s297
      %p309 = scmp.eq.s32.totalorder %s33, 3
      %p310 = por %p308, %p309
      %p312 = scmp.ne.s32.totalorder %s297, %s311
      %p313 = scmp.eq.s32.totalorder %s33, 0
      %p314 = por %p312, %p313
      %s316 = sadd.s32 %s315, 1
      %p319 = scmp.eq.s32.totalorder %s27, 3
      %p320 = scmp.ne.s32.totalorder %s315, %s317
      %p321 = scmp.eq.s32.totalorder %s27, 0
      %p322 = por %p320, %p321
      %p323 = scmp.ne.s32.totalorder %s315, %s317
      %p324 = scmp.eq.s32.totalorder %s32, 3
      %p325 = por %p323, %p324
      %p326 = scmp.ne.s32.totalorder %s317, %s318
      %p327 = scmp.eq.s32.totalorder %s32, 0
      %p328 = por %p326, %p327
      %p329 = scmp.ne.s32.totalorder %s317, %s318
      %p330 = scmp.eq.s32.totalorder %s33, 3
      %p331 = por %p329, %p330
      %p333 = scmp.ne.s32.totalorder %s318, %s332
      %p334 = scmp.eq.s32.totalorder %s33, 0
      %p335 = por %p333, %p334
      %s336 = ssub.s32 %s34, %s46
      %s337 = ssub.s32 %s35, %s42
      %s338 = sor.u32 %s336, %s337
      %p339 = scmp.eq.s32.totalorder %s338, 0
      %s341 = sadd.s32 %s340, 1
      %s342 = scalar_select %p339, %s340, %s341
      %p345 = pneg %p339
      %p346 = scmp.eq.s32.totalorder %s27, 3
      %p347 = por %p345, %p346
      %p348 = scmp.ne.s32.totalorder %s340, %s343
      %p349 = scmp.eq.s32.totalorder %s27, 0
      %p350 = por %p348, %p349
      %p351 = scmp.ne.s32.totalorder %s340, %s343
      %p352 = scmp.eq.s32.totalorder %s32, 3
      %p353 = por %p351, %p352
      %p354 = scmp.ne.s32.totalorder %s343, %s344
      %p355 = scmp.eq.s32.totalorder %s32, 0
      %p356 = por %p354, %p355
      %p357 = scmp.ne.s32.totalorder %s343, %s344
      %p358 = scmp.eq.s32.totalorder %s33, 3
      %p359 = por %p357, %p358
      %p361 = scmp.ne.s32.totalorder %s344, %s360
      %p362 = scmp.eq.s32.totalorder %s33, 0
      %p363 = por %p361, %p362
      %p364 = scmp.le.s32.totalorder 1, %s27
      %p365 = scmp.lt.s32.totalorder %s27, 5
      %p366 = pnand %p364, %p365
      %p367 = pneg %p366
      // Predicated region
      $region9: #{tpu_custom_call.1} parent=5 // pred_check
        _
      $region10: #{tpu_custom_call.1} parent=5 // pred_check_branch
        %369 = sbr.rel (%p366) target = $region12
      $region11: #{tpu_custom_call.1} parent=5 // pred_region
        %s370 = ssub.s32 %s27, 1
        // Predicated region
        $region13: #{tpu_custom_call.1} parent=11 // pred_check
          %p371 = pneg %p160
        $region14: #{tpu_custom_call.1} parent=11 // pred_check_branch
          %373 = sbr.rel (%p371) target = $region16
        $region15: #{tpu_custom_call.1} parent=11 // pred_region
          _
        $region16: #{tpu_custom_call.1} parent=11 // pred_fallthru
          _
        // Predicated region
        $region17: #{tpu_custom_call.1} parent=11 // pred_check
          %p374 = pneg %p181
        $region18: #{tpu_custom_call.1} parent=11 // pred_check_branch
          %376 = sbr.rel (%p374) target = $region20
        $region19: #{tpu_custom_call.1} parent=11 // pred_region
          _
        $region20: #{tpu_custom_call.1} parent=11 // pred_fallthru
          _
        // Predicated region
        $region21: #{tpu_custom_call.1} parent=11 // pred_check
          %p377 = pneg %p202
        $region22: #{tpu_custom_call.1} parent=11 // pred_check_branch
          %379 = sbr.rel (%p377) target = $region24
        $region23: #{tpu_custom_call.1} parent=11 // pred_region
          _
        $region24: #{tpu_custom_call.1} parent=11 // pred_fallthru
          _
        // Predicated region
        $region25: #{tpu_custom_call.1} parent=11 // pred_check
          %p380 = pneg %p223
        $region26: #{tpu_custom_call.1} parent=11 // pred_check_branch
          %382 = sbr.rel (%p380) target = $region28
        $region27: #{tpu_custom_call.1} parent=11 // pred_region
          _
        $region28: #{tpu_custom_call.1} parent=11 // pred_fallthru
          _
        // Predicated region
        $region29: #{tpu_custom_call.1} parent=11 // pred_check
          %p383 = pneg %p244
        $region30: #{tpu_custom_call.1} parent=11 // pred_check_branch
          %385 = sbr.rel (%p383) target = $region32
        $region31: #{tpu_custom_call.1} parent=11 // pred_region
          _
        $region32: #{tpu_custom_call.1} parent=11 // pred_fallthru
          _
        // Predicated region
        $region33: #{tpu_custom_call.1} parent=11 // pred_check
          %p386 = pneg %p265
        $region34: #{tpu_custom_call.1} parent=11 // pred_check_branch
          %388 = sbr.rel (%p386) target = $region36
        $region35: #{tpu_custom_call.1} parent=11 // pred_region
          _
        $region36: #{tpu_custom_call.1} parent=11 // pred_fallthru
          _
        // Predicated region
        $region37: #{tpu_custom_call.1} parent=11 // pred_check
          %p389 = pneg %p286
        $region38: #{tpu_custom_call.1} parent=11 // pred_check_branch
          %391 = sbr.rel (%p389) target = $region40
        $region39: #{tpu_custom_call.1} parent=11 // pred_region
          _
        $region40: #{tpu_custom_call.1} parent=11 // pred_fallthru
          _
        // Predicated region
        $region41: #{tpu_custom_call.1} parent=11 // pred_check
          %p392 = pneg %p307
        $region42: #{tpu_custom_call.1} parent=11 // pred_check_branch
          %394 = sbr.rel (%p392) target = $region44
        $region43: #{tpu_custom_call.1} parent=11 // pred_region
          _
        $region44: #{tpu_custom_call.1} parent=11 // pred_fallthru
          _
        // Predicated region
        $region45: #{tpu_custom_call.1} parent=11 // pred_check
          %p395 = pneg %p328
        $region46: #{tpu_custom_call.1} parent=11 // pred_check_branch
          %397 = sbr.rel (%p395) target = $region48
        $region47: #{tpu_custom_call.1} parent=11 // pred_region
          _
        $region48: #{tpu_custom_call.1} parent=11 // pred_fallthru
          _
      $region12: #{tpu_custom_call.1} parent=5 // pred_fallthru
        _
      %p398 = scmp.lt.s32.totalorder %s27, 4
      // Predicated region
      $region49: #{tpu_custom_call.1} parent=5 // pred_check
        %p399 = pneg %p398
      $region50: #{tpu_custom_call.1} parent=5 // pred_check_branch
        %401 = sbr.rel (%p399) target = $region52
      $region51: #{tpu_custom_call.1} parent=5 // pred_region
        // Predicated region
        $region53: #{tpu_custom_call.1} parent=51 // pred_check
          %p402 = pneg %p61
        $region54: #{tpu_custom_call.1} parent=51 // pred_check_branch
          %404 = sbr.rel (%p402) target = $region56
        $region55: #{tpu_custom_call.1} parent=51 // pred_region
          %s405 = sand.u32 %s51, 1
          %s406 = scalar_lea.sflag [#allocation4], %s405
          %s407 = sand.u32 %s51, 1
          %s408 = smul.addr %s407, 128
          %s409 = scalar_lea.vmem [#allocation3], %s408
          %s410 = smul.u32 8, %s35
          %s412 = ssub.s32 2048, 2048
          %413 = vsyncadd %s406, %s412
          %s414 = smul.addr %s410, 2
          %s415 = smul.addr %s34, 32
          %s416 = sadd.s32 %s414, %s415
          %s417 = smul.addr %s416, 128
          %s418 = scalar_lea.hbm %s0, %s417
          %s419 = sshll.u32 %s409, 4
          %s420 = int_to_ptr.vmem [resolvable:$true] %s419
          %425 = dma.hbm_to_vmem [thread:$0]  %s418, 2048, %s420, %s406, 128, 128, 8
        $region56: #{tpu_custom_call.1} parent=51 // pred_fallthru
          _
        // Predicated region
        $region57: #{tpu_custom_call.1} parent=51 // pred_check
          %p426 = pneg %p97
        $region58: #{tpu_custom_call.1} parent=51 // pred_check_branch
          %428 = sbr.rel (%p426) target = $region60
        $region59: #{tpu_custom_call.1} parent=51 // pred_region
          %s429 = sand.u32 %s27, 1
          %s430 = scalar_lea.sflag [#allocation7], %s429
          %s431 = sand.u32 %s87, 1
          %s432 = smul.addr %s431, 16
          %s433 = scalar_lea.vmem [#allocation6], %s432
          %s434 = smul.u32 %s35, 8
          %s435 = ssub.s32 %s434, 1
          %p436 = scmp.gt.s32.totalorder %s435, 0
          %s437 = scalar_select %p436, %s435, 0
          %s439 = ssub.s32 256, 256
          %440 = vsyncadd %s430, %s439
          %s441 = smul.addr %s437, 2
          %s442 = smul.addr %s34, 32
          %s443 = sadd.s32 %s441, %s442
          %s444 = smul.addr %s443, 128
          %s445 = scalar_lea.hbm %s1, %s444
          %s446 = sshll.u32 %s433, 4
          %s447 = int_to_ptr.vmem [resolvable:$true] %s446
          %452 = dma.hbm_to_vmem [thread:$0]  %s445, 256, %s447, %s430, 128, 128, 8
        $region60: #{tpu_custom_call.1} parent=51 // pred_fallthru
          _
        // Predicated region
        $region61: #{tpu_custom_call.1} parent=51 // pred_check
          %p453 = pneg %p133
        $region62: #{tpu_custom_call.1} parent=51 // pred_check_branch
          %455 = sbr.rel (%p453) target = $region64
        $region63: #{tpu_custom_call.1} parent=51 // pred_region
          %s456 = sand.u32 %s27, 1
          %s457 = scalar_lea.sflag [#allocation7], %s456
          %s458 = sand.u32 %s123, 1
          %s459 = smul.addr %s458, 16
          %s460 = scalar_lea.vmem [#allocation8], %s459
          %s461 = sadd.s32 %s35, 1
          %s462 = smul.u32 %s461, 8
          %p463 = scmp.lt.s32.totalorder %s462, 15
          %s464 = scalar_select %p463, %s462, 15
          %s466 = ssub.s32 256, 256
          %467 = vsyncadd %s457, %s466
          %s468 = smul.addr %s464, 2
          %s469 = smul.addr %s34, 32
          %s470 = sadd.s32 %s468, %s469
          %s471 = smul.addr %s470, 128
          %s472 = scalar_lea.hbm %s2, %s471
          %s473 = sshll.u32 %s460, 4
          %s474 = int_to_ptr.vmem [resolvable:$true] %s473
          %479 = dma.hbm_to_vmem [thread:$0]  %s472, 256, %s474, %s457, 128, 128, 8
        $region64: #{tpu_custom_call.1} parent=51 // pred_fallthru
          _
      $region52: #{tpu_custom_call.1} parent=5 // pred_fallthru
        _
      %p480 = scmp.le.s32.totalorder 1, %s27
      %p481 = scmp.lt.s32.totalorder %s27, 5
      %p482 = pnand %p480, %p481
      %p483 = pneg %p482
      // Predicated region
      $region65: #{tpu_custom_call.1} parent=5 // pred_check
        _
      $region66: #{tpu_custom_call.1} parent=5 // pred_check_branch
        %485 = sbr.rel (%p482) target = $region68
      $region67: #{tpu_custom_call.1} parent=5 // pred_region
        %s486 = ssub.s32 %s27, 1
        %s487 = sand.u32 %s54, 1
        %s488 = scalar_lea.sflag [#allocation4], %s487
        %s489 = sand.u32 %s54, 1
        %s490 = smul.addr %s489, 128
        %s491 = scalar_lea.vmem [#allocation3], %s490
        // Predicated region
        $region69: #{tpu_custom_call.1} parent=67 // pred_check
          %p492 = pneg %p67
        $region70: #{tpu_custom_call.1} parent=67 // pred_check_branch
          %494 = sbr.rel (%p492) target = $region72
        $region71: #{tpu_custom_call.1} parent=67 // pred_region
          %495 = dma.done %s488, 2048
        $region72: #{tpu_custom_call.1} parent=67 // pred_fallthru
          _
        %s496 = sand.u32 %s32, 1
        %s497 = scalar_lea.sflag [#allocation7], %s496
        %s498 = sand.u32 %s90, 1
        %s499 = smul.addr %s498, 16
        %s500 = scalar_lea.vmem [#allocation6], %s499
        // Predicated region
        $region73: #{tpu_custom_call.1} parent=67 // pred_check
          %p501 = pneg %p103
        $region74: #{tpu_custom_call.1} parent=67 // pred_check_branch
          %503 = sbr.rel (%p501) target = $region76
        $region75: #{tpu_custom_call.1} parent=67 // pred_region
          %504 = dma.done %s497, 256
        $region76: #{tpu_custom_call.1} parent=67 // pred_fallthru
          _
        %s505 = sand.u32 %s32, 1
        %s506 = scalar_lea.sflag [#allocation7], %s505
        %s507 = sand.u32 %s126, 1
        %s508 = smul.addr %s507, 16
        %s509 = scalar_lea.vmem [#allocation8], %s508
        // Predicated region
        $region77: #{tpu_custom_call.1} parent=67 // pred_check
          %p510 = pneg %p139
        $region78: #{tpu_custom_call.1} parent=67 // pred_check_branch
          %512 = sbr.rel (%p510) target = $region80
        $region79: #{tpu_custom_call.1} parent=67 // pred_region
          %513 = dma.done %s506, 256
        $region80: #{tpu_custom_call.1} parent=67 // pred_fallthru
          _
        %s514 = sand.u32 %s54, 1
        %s515 = scalar_lea.sflag [#allocation4], %s514
        %s516 = sand.u32 %s54, 1
        %s517 = smul.addr %s516, 128
        %s518 = scalar_lea.vmem [#allocation3], %s517
        %p519 = pneg %p67
        %p520 = pneg %p64
        %s521 = sand.u32 %s32, 1
        %s522 = scalar_lea.sflag [#allocation7], %s521
        %s523 = sand.u32 %s90, 1
        %s524 = smul.addr %s523, 16
        %s525 = scalar_lea.vmem [#allocation6], %s524
        %p526 = pneg %p103
        %p527 = pneg %p100
        %s528 = sand.u32 %s32, 1
        %s529 = scalar_lea.sflag [#allocation7], %s528
        %s530 = sand.u32 %s126, 1
        %s531 = smul.addr %s530, 16
        %s532 = scalar_lea.vmem [#allocation8], %s531
        %p533 = pneg %p139
        %p534 = pneg %p136
        %p535 = pneg %p160
        %p536 = pneg %p157
        %p537 = pneg %p181
        %p538 = pneg %p178
        %p539 = pneg %p202
        %p540 = pneg %p199
        %p541 = pneg %p223
        %p542 = pneg %p220
        %p543 = pneg %p244
        %p544 = pneg %p241
        %p545 = pneg %p265
        %p546 = pneg %p262
        %p547 = pneg %p286
        %p548 = pneg %p283
        %p549 = pneg %p307
        %p550 = pneg %p304
        %p551 = pneg %p328
        %p552 = pneg %p325
        %p553 = pneg %p356
        %p554 = pneg %p353
        %s555 = sand.u32 %s343, 1
        %s556 = scalar_lea.sflag [#allocation5], %s555
        %s557 = sand.u32 %s343, 1
        %s558 = smul.addr %s557, 128
        %s559 = scalar_lea.vmem [#allocation9], %s558
        %s560 = smul.u32 8, %s37
        %s561 = smul.u32 %s37, 8
        %s562 = ssub.s32 %s561, 1
        %p563 = scmp.gt.s32.totalorder %s562, 0
        %s564 = scalar_select %p563, %s562, 0
        %s565 = sadd.s32 %s37, 1
        %s566 = smul.u32 %s565, 8
        %p567 = scmp.lt.s32.totalorder %s566, 15
        %s568 = scalar_select %p567, %s566, 15
        %s569 = smul.u32 8, %s37
        %v570 = vld [vmem:[%s3] sm:$0xff]
        %v571 = vld [vmem:[%s3 + $0x8] sm:$0xff]
        %v572 = vld [vmem:[%s3 + $0x10] sm:$0xff]
        %v573 = vld [vmem:[%s3 + $0x18] sm:$0xff]
        %v574 = vld [vmem:[%s6] sm:$0x1]
        %v575 = vld [vmem:[%s7] sm:$0x1]
        %vm576 = vcmask 64512
        %577 = vst.msk [vmem:[#allocation2] sm:$0xff] %vm576, 0.0
        %578 = vst.msk [vmem:[#allocation2 + $0x8] sm:$0xff] %vm576, 0.0
        %vm579 = vcmask 58368
        %580 = vst.msk [vmem:[#allocation2 + $0x10] sm:$0x3] %vm579, 0.0
        %581 = vst.msk [vmem:[#allocation2 + $0x18] sm:$0xff] %vm576, 0.0
        %582 = vst.msk [vmem:[#allocation2 + $0x20] sm:$0xff] %vm576, 0.0
        %583 = vst.msk [vmem:[#allocation2 + $0x28] sm:$0x3] %vm579, 0.0
        %584 = vst.msk [vmem:[#allocation2 + $0x30] sm:$0xff] %vm576, 0.0
        %585 = vst.msk [vmem:[#allocation2 + $0x38] sm:$0xff] %vm576, 0.0
        %586 = vst.msk [vmem:[#allocation2 + $0x40] sm:$0x3] %vm579, 0.0
        %587 = vst.msk [vmem:[#allocation2 + $0x48] sm:$0xff] %vm576, 0.0
        %588 = vst.msk [vmem:[#allocation2 + $0x50] sm:$0xff] %vm576, 0.0
        %589 = vst.msk [vmem:[#allocation2 + $0x58] sm:$0x3] %vm579, 0.0
        %590 = vst.msk [vmem:[#allocation2 + $0x60] sm:$0xff] %vm576, 0.0
        %591 = vst.msk [vmem:[#allocation2 + $0x68] sm:$0xff] %vm576, 0.0
        %592 = vst.msk [vmem:[#allocation2 + $0x70] sm:$0x3] %vm579, 0.0
        %593 = vst.msk [vmem:[#allocation2 + $0x78] sm:$0xff] %vm576, 0.0
        %594 = vst.msk [vmem:[#allocation2 + $0x80] sm:$0xff] %vm576, 0.0
        %595 = vst.msk [vmem:[#allocation2 + $0x88] sm:$0x3] %vm579, 0.0
        %596 = vst.msk [vmem:[#allocation2 + $0x90] sm:$0xff] %vm576, 0.0
        %597 = vst.msk [vmem:[#allocation2 + $0x98] sm:$0xff] %vm576, 0.0
        %598 = vst.msk [vmem:[#allocation2 + $0xa0] sm:$0x3] %vm579, 0.0
        %599 = vst.msk [vmem:[#allocation2 + $0xa8] sm:$0xff] %vm576, 0.0
        %600 = vst.msk [vmem:[#allocation2 + $0xb0] sm:$0xff] %vm576, 0.0
        %601 = vst.msk [vmem:[#allocation2 + $0xb8] sm:$0x3] %vm579, 0.0
        %602 = vst.msk [vmem:[#allocation2 + $0xc0] sm:$0xff] %vm576, 0.0
        %603 = vst.msk [vmem:[#allocation2 + $0xc8] sm:$0xff] %vm576, 0.0
        %604 = vst.msk [vmem:[#allocation2 + $0xd0] sm:$0x3] %vm579, 0.0
        %605 = vst.msk [vmem:[#allocation2 + $0xd8] sm:$0xff] %vm576, 0.0
        %606 = vst.msk [vmem:[#allocation2 + $0xe0] sm:$0xff] %vm576, 0.0
        %607 = vst.msk [vmem:[#allocation2 + $0xe8] sm:$0x3] %vm579, 0.0
        %v608 = vld [vmem:[%s491] sm:$0xff]
        %v609 = vld [vmem:[%s491 + $0x8] sm:$0xff]
        %v610 = vld [vmem:[%s491 + $0x10] sm:$0xff]
        %v611 = vld [vmem:[%s491 + $0x18] sm:$0xff]
        %v612 = vld [vmem:[%s491 + $0x20] sm:$0xff]
        %v613 = vld [vmem:[%s491 + $0x28] sm:$0xff]
        %v614 = vld [vmem:[%s491 + $0x30] sm:$0xff]
        %v615 = vld [vmem:[%s491 + $0x38] sm:$0xff]
        %v616 = vld [vmem:[%s491 + $0x40] sm:$0xff]
        %v617 = vld [vmem:[%s491 + $0x48] sm:$0xff]
        %v618 = vld [vmem:[%s491 + $0x50] sm:$0xff]
        %v619 = vld [vmem:[%s491 + $0x58] sm:$0xff]
        %v620 = vld [vmem:[%s491 + $0x60] sm:$0xff]
        %v621 = vld [vmem:[%s491 + $0x68] sm:$0xff]
        %v622 = vld [vmem:[%s491 + $0x70] sm:$0xff]
        %v623 = vld [vmem:[%s491 + $0x78] sm:$0xff]
        %vm624 = vcmask 261120
        %v626 = vsel %vm624, %v608, 0
        %v629 = vsel %vm624, %v609, 0
        %v632 = vsel %vm624, %v610, 0
        %v635 = vsel %vm624, %v611, 0
        %v638 = vsel %vm624, %v612, 0
        %v641 = vsel %vm624, %v613, 0
        %v644 = vsel %vm624, %v614, 0
        %v647 = vsel %vm624, %v615, 0
        %v650 = vsel %vm624, %v616, 0
        %v653 = vsel %vm624, %v617, 0
        %v656 = vsel %vm624, %v618, 0
        %v659 = vsel %vm624, %v619, 0
        %v662 = vsel %vm624, %v620, 0
        %v665 = vsel %vm624, %v621, 0
        %v668 = vsel %vm624, %v622, 0
        %v671 = vsel %vm624, %v623, 0
        %673 = vmatprep.subr.mxu0 0.0
        %674 = vmatpush1.msra.mxu0 %v570
        %675 = vmatprep.subr.mxu0 0.0
        %676 = vmatpush1.msra.mxu0 %v571
        %677 = vmatprep.subr.mxu0 0.0
        %678 = vmatpush1.msra.mxu0 %v572
        %679 = vmatprep.subr.mxu0 0.0
        %680 = vmatpush1.msra.mxu0 %v573
        %681 = vmatprep.subr.mxu0 0.0
        %682 = vmatpush1.msra.mxu0 0.0
        %683 = vmatprep.subr.mxu0 0.0
        %684 = vmatpush1.msra.mxu0 0.0
        %685 = vmatprep.subr.mxu0 0.0
        %686 = vmatpush1.msra.mxu0 0.0
        %687 = vmatprep.subr.mxu0 0.0
        %688 = vmatpush1.msra.mxu0 0.0
        %689 = vmatprep.subr.mxu0 0.0
        %690 = vmatpush1.msra.mxu0 0.0
        %691 = vmatprep.subr.mxu0 0.0
        %692 = vmatpush1.msra.mxu0 0.0
        %693 = vmatprep.subr.mxu0 0.0
        %694 = vmatpush1.msra.mxu0 0.0
        %695 = vmatprep.subr.mxu0 0.0
        %696 = vmatpush1.msra.mxu0 0.0
        %697 = vmatprep.subr.mxu0 0.0
        %698 = vmatpush1.msra.mxu0 0.0
        %699 = vmatprep.subr.mxu0 0.0
        %700 = vmatpush1.msra.mxu0 0.0
        %701 = vmatprep.subr.mxu0 0.0
        %702 = vmatpush1.msra.mxu0 0.0
        %703 = vmatprep.subr.mxu0 0.0
        %704 = vmatpush1.msra.mxu0 0.0
        %705 = vmatprep.subr.mxu0 0.0
        %706 = vmatpush1.msra.mxu0 0.0
        %707 = vmatprep.subr.mxu0 0.0
        %708 = vmatpush1.msra.mxu0 0.0
        %709 = vmatprep.subr.mxu0 0.0
        %710 = vmatpush1.msra.mxu0 0.0
        %711 = vmatprep.subr.mxu0 0.0
        %712 = vmatpush1.msra.mxu0 0.0
        %713 = vmatprep.subr.mxu0 0.0
        %714 = vmatpush1.msra.mxu0 0.0
        %715 = vmatprep.subr.mxu0 0.0
        %716 = vmatpush1.msra.mxu0 0.0
        %717 = vmatprep.subr.mxu0 0.0
        %718 = vmatpush1.msra.mxu0 0.0
        %719 = vmatprep.subr.mxu0 0.0
        %720 = vmatpush1.msra.mxu0 0.0
        %721 = vmatprep.subr.mxu0 0.0
        %722 = vmatpush1.msra.mxu0 0.0
        %723 = vmatprep.subr.mxu0 0.0
        %724 = vmatpush1.msra.mxu0 0.0
        %725 = vmatprep.subr.mxu0 0.0
        %726 = vmatpush1.msra.mxu0 0.0
        %727 = vmatprep.subr.mxu0 0.0
        %728 = vmatpush1.msra.mxu0 0.0
        %729 = vmatprep.subr.mxu0 0.0
        %730 = vmatpush1.msra.mxu0 0.0
        %731 = vmatprep.subr.mxu0 0.0
        %732 = vmatpush1.msra.mxu0 0.0
        %733 = vmatprep.subr.mxu0 0.0
        %734 = vmatpush1.msra.mxu0 0.0
        %735 = vmatprep.subr.mxu0 0.0
        %736 = vmatpush1.msra.mxu0 0.0
        %737 = vmatprep.mubr.f32.mxu0 0.0
        %738 = vmatmul.mubr.f32.gmra.mrb[0].mxu0 %v626
        %v739 = vpop.f32.mrb[0].mxu0
        %v740 = vadd.f32 0.0, %v739
        %v741 = vpop.f32.mrb[0].mxu0
        %742 = vmatprep.mubr.f32.mxu0 0.0
        %743 = vmatmul.mubr.f32.gmra.mrb[0].mxu0 %v629
        %v744 = vpop.f32.mrb[0].mxu0
        %v745 = vadd.f32 0.0, %v744
        %v746 = vpop.f32.mrb[0].mxu0
        %747 = vmatprep.mubr.f32.mxu0 0.0
        %748 = vmatmul.mubr.f32.gmra.mrb[0].mxu0 %v632
        %v749 = vpop.f32.mrb[0].mxu0
        %v750 = vadd.f32 0.0, %v749
        %v751 = vpop.f32.mrb[0].mxu0
        %752 = vmatprep.mubr.f32.mxu0 0.0
        %753 = vmatmul.mubr.f32.gmra.mrb[0].mxu0 %v635
        %v754 = vpop.f32.mrb[0].mxu0
        %v755 = vadd.f32 0.0, %v754
        %v756 = vpop.f32.mrb[0].mxu0
        %757 = vmatprep.mubr.f32.mxu0 0.0
        %758 = vmatmul.mubr.f32.gmra.mrb[0].mxu0 %v638
        %v759 = vpop.f32.mrb[0].mxu0
        %v760 = vadd.f32 0.0, %v759
        %v761 = vpop.f32.mrb[0].mxu0
        %762 = vmatprep.mubr.f32.mxu0 0.0
        %763 = vmatmul.mubr.f32.gmra.mrb[0].mxu0 %v641
        %v764 = vpop.f32.mrb[0].mxu0
        %v765 = vadd.f32 0.0, %v764
        %v766 = vpop.f32.mrb[0].mxu0
        %767 = vmatprep.mubr.f32.mxu0 0.0
        %768 = vmatmul.mubr.f32.gmra.mrb[0].mxu0 %v644
        %v769 = vpop.f32.mrb[0].mxu0
        %v770 = vadd.f32 0.0, %v769
        %v771 = vpop.f32.mrb[0].mxu0
        %772 = vmatprep.mubr.f32.mxu0 0.0
        %773 = vmatmul.mubr.f32.gmra.mrb[0].mxu0 %v647
        %v774 = vpop.f32.mrb[0].mxu0
        %v775 = vadd.f32 0.0, %v774
        %v776 = vpop.f32.mrb[0].mxu0
        %777 = vmatprep.mubr.f32.mxu0 0.0
        %778 = vmatmul.mubr.f32.gmra.mrb[0].mxu0 %v650
        %v779 = vpop.f32.mrb[0].mxu0
        %v780 = vadd.f32 0.0, %v779
        %v781 = vpop.f32.mrb[0].mxu0
        %782 = vmatprep.mubr.f32.mxu0 0.0
        %783 = vmatmul.mubr.f32.gmra.mrb[0].mxu0 %v653
        %v784 = vpop.f32.mrb[0].mxu0
        %v785 = vadd.f32 0.0, %v784
        %v786 = vpop.f32.mrb[0].mxu0
        %787 = vmatprep.mubr.f32.mxu0 0.0
        %788 = vmatmul.mubr.f32.gmra.mrb[0].mxu0 %v656
        %v789 = vpop.f32.mrb[0].mxu0
        %v790 = vadd.f32 0.0, %v789
        %v791 = vpop.f32.mrb[0].mxu0
        %792 = vmatprep.mubr.f32.mxu0 0.0
        %793 = vmatmul.mubr.f32.gmra.mrb[0].mxu0 %v659
        %v794 = vpop.f32.mrb[0].mxu0
        %v795 = vadd.f32 0.0, %v794
        %v796 = vpop.f32.mrb[0].mxu0
        %797 = vmatprep.mubr.f32.mxu0 0.0
        %798 = vmatmul.mubr.f32.gmra.mrb[0].mxu0 %v662
        %v799 = vpop.f32.mrb[0].mxu0
        %v800 = vadd.f32 0.0, %v799
        %v801 = vpop.f32.mrb[0].mxu0
        %802 = vmatprep.mubr.f32.mxu0 0.0
        %803 = vmatmul.mubr.f32.gmra.mrb[0].mxu0 %v665
        %v804 = vpop.f32.mrb[0].mxu0
        %v805 = vadd.f32 0.0, %v804
        %v806 = vpop.f32.mrb[0].mxu0
        %807 = vmatprep.mubr.f32.mxu0 0.0
        %808 = vmatmul.mubr.f32.gmra.mrb[0].mxu0 %v668
        %v809 = vpop.f32.mrb[0].mxu0
        %v810 = vadd.f32 0.0, %v809
        %v811 = vpop.f32.mrb[0].mxu0
        %812 = vmatprep.mubr.f32.mxu0 0.0
        %813 = vmatmul.mubr.f32.gmra.mrb[0].mxu0 %v671
        %v814 = vpop.f32.mrb[0].mxu0
        %v815 = vadd.f32 0.0, %v814
        %v816 = vpop.f32.mrb[0].mxu0
        %817 = vdwg.mxu0
        %v819 = vlaneseq
        %v820 = vshrl.u32 %v819, 7
        %v821 = vsub.s32 0, %v820
        %v822 = vrot.slane %v574, %v821
        %v824 = vmul.f32 %v740, %v822
        %v825 = vmul.f32 %v745, %v822
        %v826 = vmul.f32 %v750, %v822
        %v827 = vmul.f32 %v755, %v822
        %v828 = vmul.f32 %v760, %v822
        %v829 = vmul.f32 %v765, %v822
        %v830 = vmul.f32 %v770, %v822
        %v831 = vmul.f32 %v775, %v822
        %v832 = vmul.f32 %v780, %v822
        %v833 = vmul.f32 %v785, %v822
        %v834 = vmul.f32 %v790, %v822
        %v835 = vmul.f32 %v795, %v822
        %v836 = vmul.f32 %v800, %v822
        %v837 = vmul.f32 %v805, %v822
        %v838 = vmul.f32 %v810, %v822
        %v839 = vmul.f32 %v815, %v822
        %v841 = vlaneseq
        %v842 = vshrl.u32 %v841, 7
        %v843 = vsub.s32 0, %v842
        %v844 = vrot.slane %v575, %v843
        %v846 = vadd.f32 %v824, %v844
        %v847 = vadd.f32 %v825, %v844
        %v848 = vadd.f32 %v826, %v844
        %v849 = vadd.f32 %v827, %v844
        %v850 = vadd.f32 %v828, %v844
        %v851 = vadd.f32 %v829, %v844
        %v852 = vadd.f32 %v830, %v844
        %v853 = vadd.f32 %v831, %v844
        %v854 = vadd.f32 %v832, %v844
        %v855 = vadd.f32 %v833, %v844
        %v856 = vadd.f32 %v834, %v844
        %v857 = vadd.f32 %v835, %v844
        %v858 = vadd.f32 %v836, %v844
        %v859 = vadd.f32 %v837, %v844
        %v860 = vadd.f32 %v838, %v844
        %v861 = vadd.f32 %v839, %v844
        %v862 = vmax.f32 %v846, 0.0
        %v863 = vmax.f32 %v847, 0.0
        %v864 = vmax.f32 %v848, 0.0
        %v865 = vmax.f32 %v849, 0.0
        %v866 = vmax.f32 %v850, 0.0
        %v867 = vmax.f32 %v851, 0.0
        %v868 = vmax.f32 %v852, 0.0
        %v869 = vmax.f32 %v853, 0.0
        %v870 = vmax.f32 %v854, 0.0
        %v871 = vmax.f32 %v855, 0.0
        %v872 = vmax.f32 %v856, 0.0
        %v873 = vmax.f32 %v857, 0.0
        %v874 = vmax.f32 %v858, 0.0
        %v875 = vmax.f32 %v859, 0.0
        %v876 = vmax.f32 %v860, 0.0
        %v877 = vmax.f32 %v861, 0.0
        %s878 = scalar_lea.vmem [#allocation2], 24
        %879 = vst.msk [vmem:[%s878 + $0x1] sm:$0xff] %vm576, %v862
        %880 = vst.msk [vmem:[%s878 + $0x9] sm:$0xff] %vm576, %v863
        %881 = vst.msk [vmem:[%s878 + $0x19] sm:$0xff] %vm576, %v864
        %882 = vst.msk [vmem:[%s878 + $0x21] sm:$0xff] %vm576, %v865
        %883 = vst.msk [vmem:[%s878 + $0x31] sm:$0xff] %vm576, %v866
        %884 = vst.msk [vmem:[%s878 + $0x39] sm:$0xff] %vm576, %v867
        %885 = vst.msk [vmem:[%s878 + $0x49] sm:$0xff] %vm576, %v868
        %886 = vst.msk [vmem:[%s878 + $0x51] sm:$0xff] %vm576, %v869
        %887 = vst.msk [vmem:[%s878 + $0x61] sm:$0xff] %vm576, %v870
        %888 = vst.msk [vmem:[%s878 + $0x69] sm:$0xff] %vm576, %v871
        %889 = vst.msk [vmem:[%s878 + $0x79] sm:$0xff] %vm576, %v872
        %890 = vst.msk [vmem:[%s878 + $0x81] sm:$0xff] %vm576, %v873
        %891 = vst.msk [vmem:[%s878 + $0x91] sm:$0xff] %vm576, %v874
        %892 = vst.msk [vmem:[%s878 + $0x99] sm:$0xff] %vm576, %v875
        %893 = vst.msk [vmem:[%s878 + $0xa9] sm:$0xff] %vm576, %v876
        %894 = vst.msk [vmem:[%s878 + $0xb1] sm:$0xff] %vm576, %v877
        %p895 = scmp.gt.s32.totalorder %s37, 0
        // Predicated region
        $region81: #{tpu_custom_call.1} parent=67 // pred_check
          %p896 = pneg %p895
        $region82: #{tpu_custom_call.1} parent=67 // pred_check_branch
          %898 = sbr.rel (%p896) target = $region84
        $region83: #{tpu_custom_call.1} parent=67 // pred_region
          %v899 = vld [vmem:[%s500] sm:$0xff]
          %v900 = vld [vmem:[%s500 + $0x8] sm:$0xff]
          %v902 = vsel %vm624, %v899, 0
          %v905 = vsel %vm624, %v900, 0
          %907 = vmatprep.subr.mxu0 0.0
          %908 = vmatpush1.msra.mxu0 %v570
          %909 = vmatprep.subr.mxu0 0.0
          %910 = vmatpush1.msra.mxu0 %v571
          %911 = vmatprep.subr.mxu0 0.0
          %912 = vmatpush1.msra.mxu0 %v572
          %913 = vmatprep.subr.mxu0 0.0
          %914 = vmatpush1.msra.mxu0 %v573
          %915 = vmatprep.subr.mxu0 0.0
          %916 = vmatpush1.msra.mxu0 0.0
          %917 = vmatprep.subr.mxu0 0.0
          %918 = vmatpush1.msra.mxu0 0.0
          %919 = vmatprep.subr.mxu0 0.0
          %920 = vmatpush1.msra.mxu0 0.0
          %921 = vmatprep.subr.mxu0 0.0
          %922 = vmatpush1.msra.mxu0 0.0
          %923 = vmatprep.subr.mxu0 0.0
          %924 = vmatpush1.msra.mxu0 0.0
          %925 = vmatprep.subr.mxu0 0.0
          %926 = vmatpush1.msra.mxu0 0.0
          %927 = vmatprep.subr.mxu0 0.0
          %928 = vmatpush1.msra.mxu0 0.0
          %929 = vmatprep.subr.mxu0 0.0
          %930 = vmatpush1.msra.mxu0 0.0
          %931 = vmatprep.subr.mxu0 0.0
          %932 = vmatpush1.msra.mxu0 0.0
          %933 = vmatprep.subr.mxu0 0.0
          %934 = vmatpush1.msra.mxu0 0.0
          %935 = vmatprep.subr.mxu0 0.0
          %936 = vmatpush1.msra.mxu0 0.0
          %937 = vmatprep.subr.mxu0 0.0
          %938 = vmatpush1.msra.mxu0 0.0
          %939 = vmatprep.subr.mxu0 0.0
          %940 = vmatpush1.msra.mxu0 0.0
          %941 = vmatprep.subr.mxu0 0.0
          %942 = vmatpush1.msra.mxu0 0.0
          %943 = vmatprep.subr.mxu0 0.0
          %944 = vmatpush1.msra.mxu0 0.0
          %945 = vmatprep.subr.mxu0 0.0
          %946 = vmatpush1.msra.mxu0 0.0
          %947 = vmatprep.subr.mxu0 0.0
          %948 = vmatpush1.msra.mxu0 0.0
          %949 = vmatprep.subr.mxu0 0.0
          %950 = vmatpush1.msra.mxu0 0.0
          %951 = vmatprep.subr.mxu0 0.0
          %952 = vmatpush1.msra.mxu0 0.0
          %953 = vmatprep.subr.mxu0 0.0
          %954 = vmatpush1.msra.mxu0 0.0
          %955 = vmatprep.subr.mxu0 0.0
          %956 = vmatpush1.msra.mxu0 0.0
          %957 = vmatprep.subr.mxu0 0.0
          %958 = vmatpush1.msra.mxu0 0.0
          %959 = vmatprep.subr.mxu0 0.0
          %960 = vmatpush1.msra.mxu0 0.0
          %961 = vmatprep.subr.mxu0 0.0
          %962 = vmatpush1.msra.mxu0 0.0
          %963 = vmatprep.subr.mxu0 0.0
          %964 = vmatpush1.msra.mxu0 0.0
          %965 = vmatprep.subr.mxu0 0.0
          %966 = vmatpush1.msra.mxu0 0.0
          %967 = vmatprep.subr.mxu0 0.0
          %968 = vmatpush1.msra.mxu0 0.0
          %969 = vmatprep.subr.mxu0 0.0
          %970 = vmatpush1.msra.mxu0 0.0
          %971 = vmatprep.mubr.f32.mxu0 0.0
          %972 = vmatmul.mubr.f32.gmra.mrb[0].mxu0 %v902
          %v973 = vpop.f32.mrb[0].mxu0
          %v974 = vadd.f32 0.0, %v973
          %v975 = vpop.f32.mrb[0].mxu0
          %976 = vmatprep.mubr.f32.mxu0 0.0
          %977 = vmatmul.mubr.f32.gmra.mrb[0].mxu0 %v905
          %v978 = vpop.f32.mrb[0].mxu0
          %v979 = vadd.f32 0.0, %v978
          %v980 = vpop.f32.mrb[0].mxu0
          %981 = vdwg.mxu0
          %v982 = vmul.f32 %v974, %v822
          %v983 = vmul.f32 %v979, %v822
          %v984 = vadd.f32 %v982, %v844
          %v985 = vadd.f32 %v983, %v844
          %v986 = vmax.f32 %v984, 0.0
          %v987 = vmax.f32 %v985, 0.0
          %988 = vst.msk [vmem:[#allocation2 + $0x1] sm:$0xff] %vm576, %v986
          %989 = vst.msk [vmem:[#allocation2 + $0x9] sm:$0xff] %vm576, %v987
        $region84: #{tpu_custom_call.1} parent=67 // pred_fallthru
          _
        %p990 = scmp.lt.s32.totalorder %s37, 1
        // Predicated region
        $region85: #{tpu_custom_call.1} parent=67 // pred_check
          %p991 = pneg %p990
        $region86: #{tpu_custom_call.1} parent=67 // pred_check_branch
          %993 = sbr.rel (%p991) target = $region88
        $region87: #{tpu_custom_call.1} parent=67 // pred_region
          %v994 = vld [vmem:[%s509] sm:$0xff]
          %v995 = vld [vmem:[%s509 + $0x8] sm:$0xff]
          %v997 = vsel %vm624, %v994, 0
          %v1000 = vsel %vm624, %v995, 0
          %1002 = vmatprep.subr.mxu0 0.0
          %1003 = vmatpush1.msra.mxu0 %v570
          %1004 = vmatprep.subr.mxu0 0.0
          %1005 = vmatpush1.msra.mxu0 %v571
          %1006 = vmatprep.subr.mxu0 0.0
          %1007 = vmatpush1.msra.mxu0 %v572
          %1008 = vmatprep.subr.mxu0 0.0
          %1009 = vmatpush1.msra.mxu0 %v573
          %1010 = vmatprep.subr.mxu0 0.0
          %1011 = vmatpush1.msra.mxu0 0.0
          %1012 = vmatprep.subr.mxu0 0.0
          %1013 = vmatpush1.msra.mxu0 0.0
          %1014 = vmatprep.subr.mxu0 0.0
          %1015 = vmatpush1.msra.mxu0 0.0
          %1016 = vmatprep.subr.mxu0 0.0
          %1017 = vmatpush1.msra.mxu0 0.0
          %1018 = vmatprep.subr.mxu0 0.0
          %1019 = vmatpush1.msra.mxu0 0.0
          %1020 = vmatprep.subr.mxu0 0.0
          %1021 = vmatpush1.msra.mxu0 0.0
          %1022 = vmatprep.subr.mxu0 0.0
          %1023 = vmatpush1.msra.mxu0 0.0
          %1024 = vmatprep.subr.mxu0 0.0
          %1025 = vmatpush1.msra.mxu0 0.0
          %1026 = vmatprep.subr.mxu0 0.0
          %1027 = vmatpush1.msra.mxu0 0.0
          %1028 = vmatprep.subr.mxu0 0.0
          %1029 = vmatpush1.msra.mxu0 0.0
          %1030 = vmatprep.subr.mxu0 0.0
          %1031 = vmatpush1.msra.mxu0 0.0
          %1032 = vmatprep.subr.mxu0 0.0
          %1033 = vmatpush1.msra.mxu0 0.0
          %1034 = vmatprep.subr.mxu0 0.0
          %1035 = vmatpush1.msra.mxu0 0.0
          %1036 = vmatprep.subr.mxu0 0.0
          %1037 = vmatpush1.msra.mxu0 0.0
          %1038 = vmatprep.subr.mxu0 0.0
          %1039 = vmatpush1.msra.mxu0 0.0
          %1040 = vmatprep.subr.mxu0 0.0
          %1041 = vmatpush1.msra.mxu0 0.0
          %1042 = vmatprep.subr.mxu0 0.0
          %1043 = vmatpush1.msra.mxu0 0.0
          %1044 = vmatprep.subr.mxu0 0.0
          %1045 = vmatpush1.msra.mxu0 0.0
          %1046 = vmatprep.subr.mxu0 0.0
          %1047 = vmatpush1.msra.mxu0 0.0
          %1048 = vmatprep.subr.mxu0 0.0
          %1049 = vmatpush1.msra.mxu0 0.0
          %1050 = vmatprep.subr.mxu0 0.0
          %1051 = vmatpush1.msra.mxu0 0.0
          %1052 = vmatprep.subr.mxu0 0.0
          %1053 = vmatpush1.msra.mxu0 0.0
          %1054 = vmatprep.subr.mxu0 0.0
          %1055 = vmatpush1.msra.mxu0 0.0
          %1056 = vmatprep.subr.mxu0 0.0
          %1057 = vmatpush1.msra.mxu0 0.0
          %1058 = vmatprep.subr.mxu0 0.0
          %1059 = vmatpush1.msra.mxu0 0.0
          %1060 = vmatprep.subr.mxu0 0.0
          %1061 = vmatpush1.msra.mxu0 0.0
          %1062 = vmatprep.subr.mxu0 0.0
          %1063 = vmatpush1.msra.mxu0 0.0
          %1064 = vmatprep.subr.mxu0 0.0
          %1065 = vmatpush1.msra.mxu0 0.0
          %1066 = vmatprep.mubr.f32.mxu0 0.0
          %1067 = vmatmul.mubr.f32.gmra.mrb[0].mxu0 %v997
          %v1068 = vpop.f32.mrb[0].mxu0
          %v1069 = vadd.f32 0.0, %v1068
          %v1070 = vpop.f32.mrb[0].mxu0
          %1071 = vmatprep.mubr.f32.mxu0 0.0
          %1072 = vmatmul.mubr.f32.gmra.mrb[0].mxu0 %v1000
          %v1073 = vpop.f32.mrb[0].mxu0
          %v1074 = vadd.f32 0.0, %v1073
          %v1075 = vpop.f32.mrb[0].mxu0
          %1076 = vdwg.mxu0
          %v1077 = vmul.f32 %v1069, %v822
          %v1078 = vmul.f32 %v1074, %v822
          %v1079 = vadd.f32 %v1077, %v844
          %v1080 = vadd.f32 %v1078, %v844
          %v1081 = vmax.f32 %v1079, 0.0
          %v1082 = vmax.f32 %v1080, 0.0
          %s1083 = scalar_lea.vmem [#allocation2], 216
          %1084 = vst.msk [vmem:[%s1083 + $0x1] sm:$0xff] %vm576, %v1081
          %1085 = vst.msk [vmem:[%s1083 + $0x9] sm:$0xff] %vm576, %v1082
        $region88: #{tpu_custom_call.1} parent=67 // pred_fallthru
          _
        %v1086 = vld [vmem:[#allocation2] sm:$0xff]
        %v1087 = vld [vmem:[#allocation2 + $0x8] sm:$0xff]
        %v1088 = vld [vmem:[#allocation2 + $0x18] sm:$0xff]
        %v1089 = vld [vmem:[#allocation2 + $0x20] sm:$0xff]
        %v1090 = vld [vmem:[#allocation2 + $0x30] sm:$0xff]
        %v1091 = vld [vmem:[#allocation2 + $0x38] sm:$0xff]
        %v1092 = vld [vmem:[#allocation2 + $0x48] sm:$0xff]
        %v1093 = vld [vmem:[#allocation2 + $0x50] sm:$0xff]
        %v1094 = vld [vmem:[#allocation2 + $0x60] sm:$0xff]
        %v1095 = vld [vmem:[#allocation2 + $0x68] sm:$0xff]
        %v1096 = vld [vmem:[#allocation2 + $0x78] sm:$0xff]
        %v1097 = vld [vmem:[#allocation2 + $0x80] sm:$0xff]
        %v1098 = vld [vmem:[#allocation2 + $0x90] sm:$0xff]
        %v1099 = vld [vmem:[#allocation2 + $0x98] sm:$0xff]
        %v1100 = vld [vmem:[#allocation2 + $0xa8] sm:$0xff]
        %v1101 = vld [vmem:[#allocation2 + $0xb0] sm:$0xff]
        %v1102 = vld [vmem:[#allocation2 + $0x1] sm:$0xff]
        %v1103 = vld [vmem:[#allocation2 + $0x9] sm:$0xff]
        %v1104 = vld [vmem:[#allocation2 + $0x19] sm:$0xff]
        %v1105 = vld [vmem:[#allocation2 + $0x21] sm:$0xff]
        %v1106 = vld [vmem:[#allocation2 + $0x31] sm:$0xff]
        %v1107 = vld [vmem:[#allocation2 + $0x39] sm:$0xff]
        %v1108 = vld [vmem:[#allocation2 + $0x49] sm:$0xff]
        %v1109 = vld [vmem:[#allocation2 + $0x51] sm:$0xff]
        %v1110 = vld [vmem:[#allocation2 + $0x61] sm:$0xff]
        %v1111 = vld [vmem:[#allocation2 + $0x69] sm:$0xff]
        %v1112 = vld [vmem:[#allocation2 + $0x79] sm:$0xff]
        %v1113 = vld [vmem:[#allocation2 + $0x81] sm:$0xff]
        %v1114 = vld [vmem:[#allocation2 + $0x91] sm:$0xff]
        %v1115 = vld [vmem:[#allocation2 + $0x99] sm:$0xff]
        %v1116 = vld [vmem:[#allocation2 + $0xa9] sm:$0xff]
        %v1117 = vld [vmem:[#allocation2 + $0xb1] sm:$0xff]
        %v1118 = vld [vmem:[#allocation2 + $0x2] sm:$0xff]
        %v1119 = vld [vmem:[#allocation2 + $0xa] sm:$0xff]
        %v1120 = vld [vmem:[#allocation2 + $0x1a] sm:$0xff]
        %v1121 = vld [vmem:[#allocation2 + $0x22] sm:$0xff]
        %v1122 = vld [vmem:[#allocation2 + $0x32] sm:$0xff]
        %v1123 = vld [vmem:[#allocation2 + $0x3a] sm:$0xff]
        %v1124 = vld [vmem:[#allocation2 + $0x4a] sm:$0xff]
        %v1125 = vld [vmem:[#allocation2 + $0x52] sm:$0xff]
        %v1126 = vld [vmem:[#allocation2 + $0x62] sm:$0xff]
        %v1127 = vld [vmem:[#allocation2 + $0x6a] sm:$0xff]
        %v1128 = vld [vmem:[#allocation2 + $0x7a] sm:$0xff]
        %v1129 = vld [vmem:[#allocation2 + $0x82] sm:$0xff]
        %v1130 = vld [vmem:[#allocation2 + $0x92] sm:$0xff]
        %v1131 = vld [vmem:[#allocation2 + $0x9a] sm:$0xff]
        %v1132 = vld [vmem:[#allocation2 + $0xaa] sm:$0xff]
        %v1133 = vld [vmem:[#allocation2 + $0xb2] sm:$0xff]
        %v1134 = vld [vmem:[%s878] sm:$0xff]
        %v1135 = vld [vmem:[%s878 + $0x8] sm:$0xff]
        %v1136 = vld [vmem:[%s878 + $0x18] sm:$0xff]
        %v1137 = vld [vmem:[%s878 + $0x20] sm:$0xff]
        %v1138 = vld [vmem:[%s878 + $0x30] sm:$0xff]
        %v1139 = vld [vmem:[%s878 + $0x38] sm:$0xff]
        %v1140 = vld [vmem:[%s878 + $0x48] sm:$0xff]
        %v1141 = vld [vmem:[%s878 + $0x50] sm:$0xff]
        %v1142 = vld [vmem:[%s878 + $0x60] sm:$0xff]
        %v1143 = vld [vmem:[%s878 + $0x68] sm:$0xff]
        %v1144 = vld [vmem:[%s878 + $0x78] sm:$0xff]
        %v1145 = vld [vmem:[%s878 + $0x80] sm:$0xff]
        %v1146 = vld [vmem:[%s878 + $0x90] sm:$0xff]
        %v1147 = vld [vmem:[%s878 + $0x98] sm:$0xff]
        %v1148 = vld [vmem:[%s878 + $0xa8] sm:$0xff]
        %v1149 = vld [vmem:[%s878 + $0xb0] sm:$0xff]
        %v1150 = vld [vmem:[%s878 + $0x1] sm:$0xff]
        %v1151 = vld [vmem:[%s878 + $0x9] sm:$0xff]
        %v1152 = vld [vmem:[%s878 + $0x19] sm:$0xff]
        %v1153 = vld [vmem:[%s878 + $0x21] sm:$0xff]
        %v1154 = vld [vmem:[%s878 + $0x31] sm:$0xff]
        %v1155 = vld [vmem:[%s878 + $0x39] sm:$0xff]
        %v1156 = vld [vmem:[%s878 + $0x49] sm:$0xff]
        %v1157 = vld [vmem:[%s878 + $0x51] sm:$0xff]
        %v1158 = vld [vmem:[%s878 + $0x61] sm:$0xff]
        %v1159 = vld [vmem:[%s878 + $0x69] sm:$0xff]
        %v1160 = vld [vmem:[%s878 + $0x79] sm:$0xff]
        %v1161 = vld [vmem:[%s878 + $0x81] sm:$0xff]
        %v1162 = vld [vmem:[%s878 + $0x91] sm:$0xff]
        %v1163 = vld [vmem:[%s878 + $0x99] sm:$0xff]
        %v1164 = vld [vmem:[%s878 + $0xa9] sm:$0xff]
        %v1165 = vld [vmem:[%s878 + $0xb1] sm:$0xff]
        %v1166 = vld [vmem:[%s878 + $0x2] sm:$0xff]
        %v1167 = vld [vmem:[%s878 + $0xa] sm:$0xff]
        %v1168 = vld [vmem:[%s878 + $0x1a] sm:$0xff]
        %v1169 = vld [vmem:[%s878 + $0x22] sm:$0xff]
        %v1170 = vld [vmem:[%s878 + $0x32] sm:$0xff]
        %v1171 = vld [vmem:[%s878 + $0x3a] sm:$0xff]
        %v1172 = vld [vmem:[%s878 + $0x4a] sm:$0xff]
        %v1173 = vld [vmem:[%s878 + $0x52] sm:$0xff]
        %v1174 = vld [vmem:[%s878 + $0x62] sm:$0xff]
        %v1175 = vld [vmem:[%s878 + $0x6a] sm:$0xff]
        %v1176 = vld [vmem:[%s878 + $0x7a] sm:$0xff]
        %v1177 = vld [vmem:[%s878 + $0x82] sm:$0xff]
        %v1178 = vld [vmem:[%s878 + $0x92] sm:$0xff]
        %v1179 = vld [vmem:[%s878 + $0x9a] sm:$0xff]
        %v1180 = vld [vmem:[%s878 + $0xaa] sm:$0xff]
        %v1181 = vld [vmem:[%s878 + $0xb2] sm:$0xff]
        %s1182 = scalar_lea.vmem [#allocation2], 48
        %v1183 = vld [vmem:[%s1182] sm:$0xff]
        %v1184 = vld [vmem:[%s1182 + $0x8] sm:$0xff]
        %v1185 = vld [vmem:[%s1182 + $0x18] sm:$0xff]
        %v1186 = vld [vmem:[%s1182 + $0x20] sm:$0xff]
        %v1187 = vld [vmem:[%s1182 + $0x30] sm:$0xff]
        %v1188 = vld [vmem:[%s1182 + $0x38] sm:$0xff]
        %v1189 = vld [vmem:[%s1182 + $0x48] sm:$0xff]
        %v1190 = vld [vmem:[%s1182 + $0x50] sm:$0xff]
        %v1191 = vld [vmem:[%s1182 + $0x60] sm:$0xff]
        %v1192 = vld [vmem:[%s1182 + $0x68] sm:$0xff]
        %v1193 = vld [vmem:[%s1182 + $0x78] sm:$0xff]
        %v1194 = vld [vmem:[%s1182 + $0x80] sm:$0xff]
        %v1195 = vld [vmem:[%s1182 + $0x90] sm:$0xff]
        %v1196 = vld [vmem:[%s1182 + $0x98] sm:$0xff]
        %v1197 = vld [vmem:[%s1182 + $0xa8] sm:$0xff]
        %v1198 = vld [vmem:[%s1182 + $0xb0] sm:$0xff]
        %v1199 = vld [vmem:[%s1182 + $0x1] sm:$0xff]
        %v1200 = vld [vmem:[%s1182 + $0x9] sm:$0xff]
        %v1201 = vld [vmem:[%s1182 + $0x19] sm:$0xff]
        %v1202 = vld [vmem:[%s1182 + $0x21] sm:$0xff]
        %v1203 = vld [vmem:[%s1182 + $0x31] sm:$0xff]
        %v1204 = vld [vmem:[%s1182 + $0x39] sm:$0xff]
        %v1205 = vld [vmem:[%s1182 + $0x49] sm:$0xff]
        %v1206 = vld [vmem:[%s1182 + $0x51] sm:$0xff]
        %v1207 = vld [vmem:[%s1182 + $0x61] sm:$0xff]
        %v1208 = vld [vmem:[%s1182 + $0x69] sm:$0xff]
        %v1209 = vld [vmem:[%s1182 + $0x79] sm:$0xff]
        %v1210 = vld [vmem:[%s1182 + $0x81] sm:$0xff]
        %v1211 = vld [vmem:[%s1182 + $0x91] sm:$0xff]
        %v1212 = vld [vmem:[%s1182 + $0x99] sm:$0xff]
        %v1213 = vld [vmem:[%s1182 + $0xa9] sm:$0xff]
        %v1214 = vld [vmem:[%s1182 + $0xb1] sm:$0xff]
        %v1215 = vld [vmem:[%s1182 + $0x2] sm:$0xff]
        %v1216 = vld [vmem:[%s1182 + $0xa] sm:$0xff]
        %v1217 = vld [vmem:[%s1182 + $0x1a] sm:$0xff]
        %v1218 = vld [vmem:[%s1182 + $0x22] sm:$0xff]
        %v1219 = vld [vmem:[%s1182 + $0x32] sm:$0xff]
        %v1220 = vld [vmem:[%s1182 + $0x3a] sm:$0xff]
        %v1221 = vld [vmem:[%s1182 + $0x4a] sm:$0xff]
        %v1222 = vld [vmem:[%s1182 + $0x52] sm:$0xff]
        %v1223 = vld [vmem:[%s1182 + $0x62] sm:$0xff]
        %v1224 = vld [vmem:[%s1182 + $0x6a] sm:$0xff]
        %v1225 = vld [vmem:[%s1182 + $0x7a] sm:$0xff]
        %v1226 = vld [vmem:[%s1182 + $0x82] sm:$0xff]
        %v1227 = vld [vmem:[%s1182 + $0x92] sm:$0xff]
        %v1228 = vld [vmem:[%s1182 + $0x9a] sm:$0xff]
        %v1229 = vld [vmem:[%s1182 + $0xaa] sm:$0xff]
        %v1230 = vld [vmem:[%s1182 + $0xb2] sm:$0xff]
        %1247 = vrot.lane.b32.xlu0 %v1102, 8
        %v1248 = vpop.permute.xlu0 %1247
        %1249 = vrot.lane.b32.xlu0 %v1103, 8
        %v1250 = vpop.permute.xlu0 %1249
        %1251 = vrot.lane.b32.xlu0 %v1104, 8
        %v1252 = vpop.permute.xlu0 %1251
        %1253 = vrot.lane.b32.xlu0 %v1105, 8
        %v1254 = vpop.permute.xlu0 %1253
        %1255 = vrot.lane.b32.xlu0 %v1106, 8
        %v1256 = vpop.permute.xlu0 %1255
        %1257 = vrot.lane.b32.xlu0 %v1107, 8
        %v1258 = vpop.permute.xlu0 %1257
        %1259 = vrot.lane.b32.xlu0 %v1108, 8
        %v1260 = vpop.permute.xlu0 %1259
        %1261 = vrot.lane.b32.xlu0 %v1109, 8
        %v1262 = vpop.permute.xlu0 %1261
        %1263 = vrot.lane.b32.xlu0 %v1110, 8
        %v1264 = vpop.permute.xlu0 %1263
        %1265 = vrot.lane.b32.xlu0 %v1111, 8
        %v1266 = vpop.permute.xlu0 %1265
        %1267 = vrot.lane.b32.xlu0 %v1112, 8
        %v1268 = vpop.permute.xlu0 %1267
        %1269 = vrot.lane.b32.xlu0 %v1113, 8
        %v1270 = vpop.permute.xlu0 %1269
        %1271 = vrot.lane.b32.xlu0 %v1114, 8
        %v1272 = vpop.permute.xlu0 %1271
        %1273 = vrot.lane.b32.xlu0 %v1115, 8
        %v1274 = vpop.permute.xlu0 %1273
        %1275 = vrot.lane.b32.xlu0 %v1116, 8
        %v1276 = vpop.permute.xlu0 %1275
        %1277 = vrot.lane.b32.xlu0 %v1117, 8
        %v1278 = vpop.permute.xlu0 %1277
        %1311 = vrot.lane.b32.xlu0 %v1118, 16
        %v1312 = vpop.permute.xlu0 %1311
        %1313 = vrot.lane.b32.xlu0 %v1119, 16
        %v1314 = vpop.permute.xlu0 %1313
        %1315 = vrot.lane.b32.xlu0 %v1120, 16
        %v1316 = vpop.permute.xlu0 %1315
        %1317 = vrot.lane.b32.xlu0 %v1121, 16
        %v1318 = vpop.permute.xlu0 %1317
        %1319 = vrot.lane.b32.xlu0 %v1122, 16
        %v1320 = vpop.permute.xlu0 %1319
        %1321 = vrot.lane.b32.xlu0 %v1123, 16
        %v1322 = vpop.permute.xlu0 %1321
        %1323 = vrot.lane.b32.xlu0 %v1124, 16
        %v1324 = vpop.permute.xlu0 %1323
        %1325 = vrot.lane.b32.xlu0 %v1125, 16
        %v1326 = vpop.permute.xlu0 %1325
        %1327 = vrot.lane.b32.xlu0 %v1126, 16
        %v1328 = vpop.permute.xlu0 %1327
        %1329 = vrot.lane.b32.xlu0 %v1127, 16
        %v1330 = vpop.permute.xlu0 %1329
        %1331 = vrot.lane.b32.xlu0 %v1128, 16
        %v1332 = vpop.permute.xlu0 %1331
        %1333 = vrot.lane.b32.xlu0 %v1129, 16
        %v1334 = vpop.permute.xlu0 %1333
        %1335 = vrot.lane.b32.xlu0 %v1130, 16
        %v1336 = vpop.permute.xlu0 %1335
        %1337 = vrot.lane.b32.xlu0 %v1131, 16
        %v1338 = vpop.permute.xlu0 %1337
        %1339 = vrot.lane.b32.xlu0 %v1132, 16
        %v1340 = vpop.permute.xlu0 %1339
        %1341 = vrot.lane.b32.xlu0 %v1133, 16
        %v1342 = vpop.permute.xlu0 %1341
        %1375 = vrot.lane.b32.xlu0 %v1134, 24
        %v1376 = vpop.permute.xlu0 %1375
        %1377 = vrot.lane.b32.xlu0 %v1135, 24
        %v1378 = vpop.permute.xlu0 %1377
        %1379 = vrot.lane.b32.xlu0 %v1136, 24
        %v1380 = vpop.permute.xlu0 %1379
        %1381 = vrot.lane.b32.xlu0 %v1137, 24
        %v1382 = vpop.permute.xlu0 %1381
        %1383 = vrot.lane.b32.xlu0 %v1138, 24
        %v1384 = vpop.permute.xlu0 %1383
        %1385 = vrot.lane.b32.xlu0 %v1139, 24
        %v1386 = vpop.permute.xlu0 %1385
        %1387 = vrot.lane.b32.xlu0 %v1140, 24
        %v1388 = vpop.permute.xlu0 %1387
        %1389 = vrot.lane.b32.xlu0 %v1141, 24
        %v1390 = vpop.permute.xlu0 %1389
        %1391 = vrot.lane.b32.xlu0 %v1142, 24
        %v1392 = vpop.permute.xlu0 %1391
        %1393 = vrot.lane.b32.xlu0 %v1143, 24
        %v1394 = vpop.permute.xlu0 %1393
        %1395 = vrot.lane.b32.xlu0 %v1144, 24
        %v1396 = vpop.permute.xlu0 %1395
        %1397 = vrot.lane.b32.xlu0 %v1145, 24
        %v1398 = vpop.permute.xlu0 %1397
        %1399 = vrot.lane.b32.xlu0 %v1146, 24
        %v1400 = vpop.permute.xlu0 %1399
        %1401 = vrot.lane.b32.xlu0 %v1147, 24
        %v1402 = vpop.permute.xlu0 %1401
        %1403 = vrot.lane.b32.xlu0 %v1148, 24
        %v1404 = vpop.permute.xlu0 %1403
        %1405 = vrot.lane.b32.xlu0 %v1149, 24
        %v1406 = vpop.permute.xlu0 %1405
        %1439 = vrot.lane.b32.xlu0 %v1150, 32
        %v1440 = vpop.permute.xlu0 %1439
        %1441 = vrot.lane.b32.xlu0 %v1151, 32
        %v1442 = vpop.permute.xlu0 %1441
        %1443 = vrot.lane.b32.xlu0 %v1152, 32
        %v1444 = vpop.permute.xlu0 %1443
        %1445 = vrot.lane.b32.xlu0 %v1153, 32
        %v1446 = vpop.permute.xlu0 %1445
        %1447 = vrot.lane.b32.xlu0 %v1154, 32
        %v1448 = vpop.permute.xlu0 %1447
        %1449 = vrot.lane.b32.xlu0 %v1155, 32
        %v1450 = vpop.permute.xlu0 %1449
        %1451 = vrot.lane.b32.xlu0 %v1156, 32
        %v1452 = vpop.permute.xlu0 %1451
        %1453 = vrot.lane.b32.xlu0 %v1157, 32
        %v1454 = vpop.permute.xlu0 %1453
        %1455 = vrot.lane.b32.xlu0 %v1158, 32
        %v1456 = vpop.permute.xlu0 %1455
        %1457 = vrot.lane.b32.xlu0 %v1159, 32
        %v1458 = vpop.permute.xlu0 %1457
        %1459 = vrot.lane.b32.xlu0 %v1160, 32
        %v1460 = vpop.permute.xlu0 %1459
        %1461 = vrot.lane.b32.xlu0 %v1161, 32
        %v1462 = vpop.permute.xlu0 %1461
        %1463 = vrot.lane.b32.xlu0 %v1162, 32
        %v1464 = vpop.permute.xlu0 %1463
        %1465 = vrot.lane.b32.xlu0 %v1163, 32
        %v1466 = vpop.permute.xlu0 %1465
        %1467 = vrot.lane.b32.xlu0 %v1164, 32
        %v1468 = vpop.permute.xlu0 %1467
        %1469 = vrot.lane.b32.xlu0 %v1165, 32
        %v1470 = vpop.permute.xlu0 %1469
        %1503 = vrot.lane.b32.xlu0 %v1166, 40
        %v1504 = vpop.permute.xlu0 %1503
        %1505 = vrot.lane.b32.xlu0 %v1167, 40
        %v1506 = vpop.permute.xlu0 %1505
        %1507 = vrot.lane.b32.xlu0 %v1168, 40
        %v1508 = vpop.permute.xlu0 %1507
        %1509 = vrot.lane.b32.xlu0 %v1169, 40
        %v1510 = vpop.permute.xlu0 %1509
        %1511 = vrot.lane.b32.xlu0 %v1170, 40
        %v1512 = vpop.permute.xlu0 %1511
        %1513 = vrot.lane.b32.xlu0 %v1171, 40
        %v1514 = vpop.permute.xlu0 %1513
        %1515 = vrot.lane.b32.xlu0 %v1172, 40
        %v1516 = vpop.permute.xlu0 %1515
        %1517 = vrot.lane.b32.xlu0 %v1173, 40
        %v1518 = vpop.permute.xlu0 %1517
        %1519 = vrot.lane.b32.xlu0 %v1174, 40
        %v1520 = vpop.permute.xlu0 %1519
        %1521 = vrot.lane.b32.xlu0 %v1175, 40
        %v1522 = vpop.permute.xlu0 %1521
        %1523 = vrot.lane.b32.xlu0 %v1176, 40
        %v1524 = vpop.permute.xlu0 %1523
        %1525 = vrot.lane.b32.xlu0 %v1177, 40
        %v1526 = vpop.permute.xlu0 %1525
        %1527 = vrot.lane.b32.xlu0 %v1178, 40
        %v1528 = vpop.permute.xlu0 %1527
        %1529 = vrot.lane.b32.xlu0 %v1179, 40
        %v1530 = vpop.permute.xlu0 %1529
        %1531 = vrot.lane.b32.xlu0 %v1180, 40
        %v1532 = vpop.permute.xlu0 %1531
        %1533 = vrot.lane.b32.xlu0 %v1181, 40
        %v1534 = vpop.permute.xlu0 %1533
        %1567 = vrot.lane.b32.xlu0 %v1183, 48
        %v1568 = vpop.permute.xlu0 %1567
        %1569 = vrot.lane.b32.xlu0 %v1184, 48
        %v1570 = vpop.permute.xlu0 %1569
        %1571 = vrot.lane.b32.xlu0 %v1185, 48
        %v1572 = vpop.permute.xlu0 %1571
        %1573 = vrot.lane.b32.xlu0 %v1186, 48
        %v1574 = vpop.permute.xlu0 %1573
        %1575 = vrot.lane.b32.xlu0 %v1187, 48
        %v1576 = vpop.permute.xlu0 %1575
        %1577 = vrot.lane.b32.xlu0 %v1188, 48
        %v1578 = vpop.permute.xlu0 %1577
        %1579 = vrot.lane.b32.xlu0 %v1189, 48
        %v1580 = vpop.permute.xlu0 %1579
        %1581 = vrot.lane.b32.xlu0 %v1190, 48
        %v1582 = vpop.permute.xlu0 %1581
        %1583 = vrot.lane.b32.xlu0 %v1191, 48
        %v1584 = vpop.permute.xlu0 %1583
        %1585 = vrot.lane.b32.xlu0 %v1192, 48
        %v1586 = vpop.permute.xlu0 %1585
        %1587 = vrot.lane.b32.xlu0 %v1193, 48
        %v1588 = vpop.permute.xlu0 %1587
        %1589 = vrot.lane.b32.xlu0 %v1194, 48
        %v1590 = vpop.permute.xlu0 %1589
        %1591 = vrot.lane.b32.xlu0 %v1195, 48
        %v1592 = vpop.permute.xlu0 %1591
        %1593 = vrot.lane.b32.xlu0 %v1196, 48
        %v1594 = vpop.permute.xlu0 %1593
        %1595 = vrot.lane.b32.xlu0 %v1197, 48
        %v1596 = vpop.permute.xlu0 %1595
        %1597 = vrot.lane.b32.xlu0 %v1198, 48
        %v1598 = vpop.permute.xlu0 %1597
        %1631 = vrot.lane.b32.xlu0 %v1199, 56
        %v1632 = vpop.permute.xlu0 %1631
        %1633 = vrot.lane.b32.xlu0 %v1200, 56
        %v1634 = vpop.permute.xlu0 %1633
        %1635 = vrot.lane.b32.xlu0 %v1201, 56
        %v1636 = vpop.permute.xlu0 %1635
        %1637 = vrot.lane.b32.xlu0 %v1202, 56
        %v1638 = vpop.permute.xlu0 %1637
        %1639 = vrot.lane.b32.xlu0 %v1203, 56
        %v1640 = vpop.permute.xlu0 %1639
        %1641 = vrot.lane.b32.xlu0 %v1204, 56
        %v1642 = vpop.permute.xlu0 %1641
        %1643 = vrot.lane.b32.xlu0 %v1205, 56
        %v1644 = vpop.permute.xlu0 %1643
        %1645 = vrot.lane.b32.xlu0 %v1206, 56
        %v1646 = vpop.permute.xlu0 %1645
        %1647 = vrot.lane.b32.xlu0 %v1207, 56
        %v1648 = vpop.permute.xlu0 %1647
        %1649 = vrot.lane.b32.xlu0 %v1208, 56
        %v1650 = vpop.permute.xlu0 %1649
        %1651 = vrot.lane.b32.xlu0 %v1209, 56
        %v1652 = vpop.permute.xlu0 %1651
        %1653 = vrot.lane.b32.xlu0 %v1210, 56
        %v1654 = vpop.permute.xlu0 %1653
        %1655 = vrot.lane.b32.xlu0 %v1211, 56
        %v1656 = vpop.permute.xlu0 %1655
        %1657 = vrot.lane.b32.xlu0 %v1212, 56
        %v1658 = vpop.permute.xlu0 %1657
        %1659 = vrot.lane.b32.xlu0 %v1213, 56
        %v1660 = vpop.permute.xlu0 %1659
        %1661 = vrot.lane.b32.xlu0 %v1214, 56
        %v1662 = vpop.permute.xlu0 %1661
        %1695 = vrot.lane.b32.xlu0 %v1215, 64
        %v1696 = vpop.permute.xlu0 %1695
        %1697 = vrot.lane.b32.xlu0 %v1216, 64
        %v1698 = vpop.permute.xlu0 %1697
        %1699 = vrot.lane.b32.xlu0 %v1217, 64
        %v1700 = vpop.permute.xlu0 %1699
        %1701 = vrot.lane.b32.xlu0 %v1218, 64
        %v1702 = vpop.permute.xlu0 %1701
        %1703 = vrot.lane.b32.xlu0 %v1219, 64
        %v1704 = vpop.permute.xlu0 %1703
        %1705 = vrot.lane.b32.xlu0 %v1220, 64
        %v1706 = vpop.permute.xlu0 %1705
        %1707 = vrot.lane.b32.xlu0 %v1221, 64
        %v1708 = vpop.permute.xlu0 %1707
        %1709 = vrot.lane.b32.xlu0 %v1222, 64
        %v1710 = vpop.permute.xlu0 %1709
        %1711 = vrot.lane.b32.xlu0 %v1223, 64
        %v1712 = vpop.permute.xlu0 %1711
        %1713 = vrot.lane.b32.xlu0 %v1224, 64
        %v1714 = vpop.permute.xlu0 %1713
        %1715 = vrot.lane.b32.xlu0 %v1225, 64
        %v1716 = vpop.permute.xlu0 %1715
        %1717 = vrot.lane.b32.xlu0 %v1226, 64
        %v1718 = vpop.permute.xlu0 %1717
        %1719 = vrot.lane.b32.xlu0 %v1227, 64
        %v1720 = vpop.permute.xlu0 %1719
        %1721 = vrot.lane.b32.xlu0 %v1228, 64
        %v1722 = vpop.permute.xlu0 %1721
        %1723 = vrot.lane.b32.xlu0 %v1229, 64
        %v1724 = vpop.permute.xlu0 %1723
        %1725 = vrot.lane.b32.xlu0 %v1230, 64
        %v1726 = vpop.permute.xlu0 %1725
        %v1743 = vsel %vm576, %v1086, %v1248
        %v1744 = vsel %vm576, %v1087, %v1250
        %v1745 = vsel %vm576, %v1088, %v1252
        %v1746 = vsel %vm576, %v1089, %v1254
        %v1747 = vsel %vm576, %v1090, %v1256
        %v1748 = vsel %vm576, %v1091, %v1258
        %v1749 = vsel %vm576, %v1092, %v1260
        %v1750 = vsel %vm576, %v1093, %v1262
        %v1751 = vsel %vm576, %v1094, %v1264
        %v1752 = vsel %vm576, %v1095, %v1266
        %v1753 = vsel %vm576, %v1096, %v1268
        %v1754 = vsel %vm576, %v1097, %v1270
        %v1755 = vsel %vm576, %v1098, %v1272
        %v1756 = vsel %vm576, %v1099, %v1274
        %v1757 = vsel %vm576, %v1100, %v1276
        %v1758 = vsel %vm576, %v1101, %v1278
        %vm1759 = vcmask 130048
        %v1760 = vsel %vm1759, %v1743, %v1312
        %v1761 = vsel %vm1759, %v1744, %v1314
        %v1762 = vsel %vm1759, %v1745, %v1316
        %v1763 = vsel %vm1759, %v1746, %v1318
        %v1764 = vsel %vm1759, %v1747, %v1320
        %v1765 = vsel %vm1759, %v1748, %v1322
        %v1766 = vsel %vm1759, %v1749, %v1324
        %v1767 = vsel %vm1759, %v1750, %v1326
        %v1768 = vsel %vm1759, %v1751, %v1328
        %v1769 = vsel %vm1759, %v1752, %v1330
        %v1770 = vsel %vm1759, %v1753, %v1332
        %v1771 = vsel %vm1759, %v1754, %v1334
        %v1772 = vsel %vm1759, %v1755, %v1336
        %v1773 = vsel %vm1759, %v1756, %v1338
        %v1774 = vsel %vm1759, %v1757, %v1340
        %v1775 = vsel %vm1759, %v1758, %v1342
        %vm1776 = vcmask 195584
        %v1777 = vsel %vm1776, %v1760, %v1376
        %v1778 = vsel %vm1776, %v1761, %v1378
        %v1779 = vsel %vm1776, %v1762, %v1380
        %v1780 = vsel %vm1776, %v1763, %v1382
        %v1781 = vsel %vm1776, %v1764, %v1384
        %v1782 = vsel %vm1776, %v1765, %v1386
        %v1783 = vsel %vm1776, %v1766, %v1388
        %v1784 = vsel %vm1776, %v1767, %v1390
        %v1785 = vsel %vm1776, %v1768, %v1392
        %v1786 = vsel %vm1776, %v1769, %v1394
        %v1787 = vsel %vm1776, %v1770, %v1396
        %v1788 = vsel %vm1776, %v1771, %v1398
        %v1789 = vsel %vm1776, %v1772, %v1400
        %v1790 = vsel %vm1776, %v1773, %v1402
        %v1791 = vsel %vm1776, %v1774, %v1404
        %v1792 = vsel %vm1776, %v1775, %v1406
        %v1793 = vsel %vm624, %v1777, %v1440
        %v1794 = vsel %vm624, %v1778, %v1442
        %v1795 = vsel %vm624, %v1779, %v1444
        %v1796 = vsel %vm624, %v1780, %v1446
        %v1797 = vsel %vm624, %v1781, %v1448
        %v1798 = vsel %vm624, %v1782, %v1450
        %v1799 = vsel %vm624, %v1783, %v1452
        %v1800 = vsel %vm624, %v1784, %v1454
        %v1801 = vsel %vm624, %v1785, %v1456
        %v1802 = vsel %vm624, %v1786, %v1458
        %v1803 = vsel %vm624, %v1787, %v1460
        %v1804 = vsel %vm624, %v1788, %v1462
        %v1805 = vsel %vm624, %v1789, %v1464
        %v1806 = vsel %vm624, %v1790, %v1466
        %v1807 = vsel %vm624, %v1791, %v1468
        %v1808 = vsel %vm624, %v1792, %v1470
        %vm1809 = vcmask 326656
        %v1810 = vsel %vm1809, %v1793, %v1504
        %v1811 = vsel %vm1809, %v1794, %v1506
        %v1812 = vsel %vm1809, %v1795, %v1508
        %v1813 = vsel %vm1809, %v1796, %v1510
        %v1814 = vsel %vm1809, %v1797, %v1512
        %v1815 = vsel %vm1809, %v1798, %v1514
        %v1816 = vsel %vm1809, %v1799, %v1516
        %v1817 = vsel %vm1809, %v1800, %v1518
        %v1818 = vsel %vm1809, %v1801, %v1520
        %v1819 = vsel %vm1809, %v1802, %v1522
        %v1820 = vsel %vm1809, %v1803, %v1524
        %v1821 = vsel %vm1809, %v1804, %v1526
        %v1822 = vsel %vm1809, %v1805, %v1528
        %v1823 = vsel %vm1809, %v1806, %v1530
        %v1824 = vsel %vm1809, %v1807, %v1532
        %v1825 = vsel %vm1809, %v1808, %v1534
        %vm1826 = vcmask 392192
        %v1827 = vsel %vm1826, %v1810, %v1568
        %v1828 = vsel %vm1826, %v1811, %v1570
        %v1829 = vsel %vm1826, %v1812, %v1572
        %v1830 = vsel %vm1826, %v1813, %v1574
        %v1831 = vsel %vm1826, %v1814, %v1576
        %v1832 = vsel %vm1826, %v1815, %v1578
        %v1833 = vsel %vm1826, %v1816, %v1580
        %v1834 = vsel %vm1826, %v1817, %v1582
        %v1835 = vsel %vm1826, %v1818, %v1584
        %v1836 = vsel %vm1826, %v1819, %v1586
        %v1837 = vsel %vm1826, %v1820, %v1588
        %v1838 = vsel %vm1826, %v1821, %v1590
        %v1839 = vsel %vm1826, %v1822, %v1592
        %v1840 = vsel %vm1826, %v1823, %v1594
        %v1841 = vsel %vm1826, %v1824, %v1596
        %v1842 = vsel %vm1826, %v1825, %v1598
        %vm1843 = vcmask 457728
        %v1844 = vsel %vm1843, %v1827, %v1632
        %v1845 = vsel %vm1843, %v1828, %v1634
        %v1846 = vsel %vm1843, %v1829, %v1636
        %v1847 = vsel %vm1843, %v1830, %v1638
        %v1848 = vsel %vm1843, %v1831, %v1640
        %v1849 = vsel %vm1843, %v1832, %v1642
        %v1850 = vsel %vm1843, %v1833, %v1644
        %v1851 = vsel %vm1843, %v1834, %v1646
        %v1852 = vsel %vm1843, %v1835, %v1648
        %v1853 = vsel %vm1843, %v1836, %v1650
        %v1854 = vsel %vm1843, %v1837, %v1652
        %v1855 = vsel %vm1843, %v1838, %v1654
        %v1856 = vsel %vm1843, %v1839, %v1656
        %v1857 = vsel %vm1843, %v1840, %v1658
        %v1858 = vsel %vm1843, %v1841, %v1660
        %v1859 = vsel %vm1843, %v1842, %v1662
        %vm1860 = vcmask 523264
        %v1861 = vsel %vm1860, %v1844, %v1696
        %v1862 = vsel %vm1860, %v1845, %v1698
        %v1863 = vsel %vm1860, %v1846, %v1700
        %v1864 = vsel %vm1860, %v1847, %v1702
        %v1865 = vsel %vm1860, %v1848, %v1704
        %v1866 = vsel %vm1860, %v1849, %v1706
        %v1867 = vsel %vm1860, %v1850, %v1708
        %v1868 = vsel %vm1860, %v1851, %v1710
        %v1869 = vsel %vm1860, %v1852, %v1712
        %v1870 = vsel %vm1860, %v1853, %v1714
        %v1871 = vsel %vm1860, %v1854, %v1716
        %v1872 = vsel %vm1860, %v1855, %v1718
        %v1873 = vsel %vm1860, %v1856, %v1720
        %v1874 = vsel %vm1860, %v1857, %v1722
        %v1875 = vsel %vm1860, %v1858, %v1724
        %v1876 = vsel %vm1860, %v1859, %v1726
        %v1877 = vld [vmem:[%s4] sm:$0xff]
        %v1878 = vld [vmem:[%s4 + $0x8] sm:$0xff]
        %v1879 = vld [vmem:[%s4 + $0x10] sm:$0xff]
        %v1880 = vld [vmem:[%s4 + $0x18] sm:$0xff]
        %v1881 = vld [vmem:[%s4 + $0x20] sm:$0xff]
        %v1882 = vld [vmem:[%s4 + $0x28] sm:$0xff]
        %v1883 = vld [vmem:[%s4 + $0x30] sm:$0xff]
        %v1884 = vld [vmem:[%s4 + $0x38] sm:$0xff]
        %v1885 = vld [vmem:[%s4 + $0x40] sm:$0xff]
        %vm1886 = vcmask 588800
        %v1888 = vsel %vm1886, %v1861, 0
        %v1891 = vsel %vm1886, %v1862, 0
        %v1894 = vsel %vm1886, %v1863, 0
        %v1897 = vsel %vm1886, %v1864, 0
        %v1900 = vsel %vm1886, %v1865, 0
        %v1903 = vsel %vm1886, %v1866, 0
        %v1906 = vsel %vm1886, %v1867, 0
        %v1909 = vsel %vm1886, %v1868, 0
        %v1912 = vsel %vm1886, %v1869, 0
        %v1915 = vsel %vm1886, %v1870, 0
        %v1918 = vsel %vm1886, %v1871, 0
        %v1921 = vsel %vm1886, %v1872, 0
        %v1924 = vsel %vm1886, %v1873, 0
        %v1927 = vsel %vm1886, %v1874, 0
        %v1930 = vsel %vm1886, %v1875, 0
        %v1933 = vsel %vm1886, %v1876, 0
        %1935 = vmatprep.subr.mxu0 0.0
        %1936 = vmatpush1.msra.mxu0 %v1877
        %1937 = vmatprep.subr.mxu0 0.0
        %1938 = vmatpush1.msra.mxu0 %v1878
        %1939 = vmatprep.subr.mxu0 0.0
        %1940 = vmatpush1.msra.mxu0 %v1879
        %1941 = vmatprep.subr.mxu0 0.0
        %1942 = vmatpush1.msra.mxu0 %v1880
        %1943 = vmatprep.subr.mxu0 0.0
        %1944 = vmatpush1.msra.mxu0 %v1881
        %1945 = vmatprep.subr.mxu0 0.0
        %1946 = vmatpush1.msra.mxu0 %v1882
        %1947 = vmatprep.subr.mxu0 0.0
        %1948 = vmatpush1.msra.mxu0 %v1883
        %1949 = vmatprep.subr.mxu0 0.0
        %1950 = vmatpush1.msra.mxu0 %v1884
        %1951 = vmatprep.subr.mxu0 0.0
        %1952 = vmatpush1.msra.mxu0 %v1885
        %1953 = vmatprep.subr.mxu0 0.0
        %1954 = vmatpush1.msra.mxu0 0.0
        %1955 = vmatprep.subr.mxu0 0.0
        %1956 = vmatpush1.msra.mxu0 0.0
        %1957 = vmatprep.subr.mxu0 0.0
        %1958 = vmatpush1.msra.mxu0 0.0
        %1959 = vmatprep.subr.mxu0 0.0
        %1960 = vmatpush1.msra.mxu0 0.0
        %1961 = vmatprep.subr.mxu0 0.0
        %1962 = vmatpush1.msra.mxu0 0.0
        %1963 = vmatprep.subr.mxu0 0.0
        %1964 = vmatpush1.msra.mxu0 0.0
        %1965 = vmatprep.subr.mxu0 0.0
        %1966 = vmatpush1.msra.mxu0 0.0
        %1967 = vmatprep.subr.mxu0 0.0
        %1968 = vmatpush1.msra.mxu0 0.0
        %1969 = vmatprep.subr.mxu0 0.0
        %1970 = vmatpush1.msra.mxu0 0.0
        %1971 = vmatprep.subr.mxu0 0.0
        %1972 = vmatpush1.msra.mxu0 0.0
        %1973 = vmatprep.subr.mxu0 0.0
        %1974 = vmatpush1.msra.mxu0 0.0
        %1975 = vmatprep.subr.mxu0 0.0
        %1976 = vmatpush1.msra.mxu0 0.0
        %1977 = vmatprep.subr.mxu0 0.0
        %1978 = vmatpush1.msra.mxu0 0.0
        %1979 = vmatprep.subr.mxu0 0.0
        %1980 = vmatpush1.msra.mxu0 0.0
        %1981 = vmatprep.subr.mxu0 0.0
        %1982 = vmatpush1.msra.mxu0 0.0
        %1983 = vmatprep.subr.mxu0 0.0
        %1984 = vmatpush1.msra.mxu0 0.0
        %1985 = vmatprep.subr.mxu0 0.0
        %1986 = vmatpush1.msra.mxu0 0.0
        %1987 = vmatprep.subr.mxu0 0.0
        %1988 = vmatpush1.msra.mxu0 0.0
        %1989 = vmatprep.subr.mxu0 0.0
        %1990 = vmatpush1.msra.mxu0 0.0
        %1991 = vmatprep.subr.mxu0 0.0
        %1992 = vmatpush1.msra.mxu0 0.0
        %1993 = vmatprep.subr.mxu0 0.0
        %1994 = vmatpush1.msra.mxu0 0.0
        %1995 = vmatprep.subr.mxu0 0.0
        %1996 = vmatpush1.msra.mxu0 0.0
        %1997 = vmatprep.subr.mxu0 0.0
        %1998 = vmatpush1.msra.mxu0 0.0
        %1999 = vmatprep.mubr.f32.mxu0 0.0
        %2000 = vmatmul.mubr.f32.gmra.mrb[0].mxu0 %v1888
        %v2001 = vpop.f32.mrb[0].mxu0
        %v2002 = vadd.f32 0.0, %v2001
        %v2003 = vpop.f32.mrb[0].mxu0
        %2004 = vmatprep.mubr.f32.mxu0 0.0
        %2005 = vmatmul.mubr.f32.gmra.mrb[0].mxu0 %v1891
        %v2006 = vpop.f32.mrb[0].mxu0
        %v2007 = vadd.f32 0.0, %v2006
        %v2008 = vpop.f32.mrb[0].mxu0
        %2009 = vmatprep.mubr.f32.mxu0 0.0
        %2010 = vmatmul.mubr.f32.gmra.mrb[0].mxu0 %v1894
        %v2011 = vpop.f32.mrb[0].mxu0
        %v2012 = vadd.f32 0.0, %v2011
        %v2013 = vpop.f32.mrb[0].mxu0
        %2014 = vmatprep.mubr.f32.mxu0 0.0
        %2015 = vmatmul.mubr.f32.gmra.mrb[0].mxu0 %v1897
        %v2016 = vpop.f32.mrb[0].mxu0
        %v2017 = vadd.f32 0.0, %v2016
        %v2018 = vpop.f32.mrb[0].mxu0
        %2019 = vmatprep.mubr.f32.mxu0 0.0
        %2020 = vmatmul.mubr.f32.gmra.mrb[0].mxu0 %v1900
        %v2021 = vpop.f32.mrb[0].mxu0
        %v2022 = vadd.f32 0.0, %v2021
        %v2023 = vpop.f32.mrb[0].mxu0
        %2024 = vmatprep.mubr.f32.mxu0 0.0
        %2025 = vmatmul.mubr.f32.gmra.mrb[0].mxu0 %v1903
        %v2026 = vpop.f32.mrb[0].mxu0
        %v2027 = vadd.f32 0.0, %v2026
        %v2028 = vpop.f32.mrb[0].mxu0
        %2029 = vmatprep.mubr.f32.mxu0 0.0
        %2030 = vmatmul.mubr.f32.gmra.mrb[0].mxu0 %v1906
        %v2031 = vpop.f32.mrb[0].mxu0
        %v2032 = vadd.f32 0.0, %v2031
        %v2033 = vpop.f32.mrb[0].mxu0
        %2034 = vmatprep.mubr.f32.mxu0 0.0
        %2035 = vmatmul.mubr.f32.gmra.mrb[0].mxu0 %v1909
        %v2036 = vpop.f32.mrb[0].mxu0
        %v2037 = vadd.f32 0.0, %v2036
        %v2038 = vpop.f32.mrb[0].mxu0
        %2039 = vmatprep.mubr.f32.mxu0 0.0
        %2040 = vmatmul.mubr.f32.gmra.mrb[0].mxu0 %v1912
        %v2041 = vpop.f32.mrb[0].mxu0
        %v2042 = vadd.f32 0.0, %v2041
        %v2043 = vpop.f32.mrb[0].mxu0
        %2044 = vmatprep.mubr.f32.mxu0 0.0
        %2045 = vmatmul.mubr.f32.gmra.mrb[0].mxu0 %v1915
        %v2046 = vpop.f32.mrb[0].mxu0
        %v2047 = vadd.f32 0.0, %v2046
        %v2048 = vpop.f32.mrb[0].mxu0
        %2049 = vmatprep.mubr.f32.mxu0 0.0
        %2050 = vmatmul.mubr.f32.gmra.mrb[0].mxu0 %v1918
        %v2051 = vpop.f32.mrb[0].mxu0
        %v2052 = vadd.f32 0.0, %v2051
        %v2053 = vpop.f32.mrb[0].mxu0
        %2054 = vmatprep.mubr.f32.mxu0 0.0
        %2055 = vmatmul.mubr.f32.gmra.mrb[0].mxu0 %v1921
        %v2056 = vpop.f32.mrb[0].mxu0
        %v2057 = vadd.f32 0.0, %v2056
        %v2058 = vpop.f32.mrb[0].mxu0
        %2059 = vmatprep.mubr.f32.mxu0 0.0
        %2060 = vmatmul.mubr.f32.gmra.mrb[0].mxu0 %v1924
        %v2061 = vpop.f32.mrb[0].mxu0
        %v2062 = vadd.f32 0.0, %v2061
        %v2063 = vpop.f32.mrb[0].mxu0
        %2064 = vmatprep.mubr.f32.mxu0 0.0
        %2065 = vmatmul.mubr.f32.gmra.mrb[0].mxu0 %v1927
        %v2066 = vpop.f32.mrb[0].mxu0
        %v2067 = vadd.f32 0.0, %v2066
        %v2068 = vpop.f32.mrb[0].mxu0
        %2069 = vmatprep.mubr.f32.mxu0 0.0
        %2070 = vmatmul.mubr.f32.gmra.mrb[0].mxu0 %v1930
        %v2071 = vpop.f32.mrb[0].mxu0
        %v2072 = vadd.f32 0.0, %v2071
        %v2073 = vpop.f32.mrb[0].mxu0
        %2074 = vmatprep.mubr.f32.mxu0 0.0
        %2075 = vmatmul.mubr.f32.gmra.mrb[0].mxu0 %v1933
        %v2076 = vpop.f32.mrb[0].mxu0
        %v2077 = vadd.f32 0.0, %v2076
        %v2078 = vpop.f32.mrb[0].mxu0
        %2079 = vdwg.mxu0
        %v2080 = vld [vmem:[%s8] sm:$0x1]
        %v2082 = vlaneseq
        %v2083 = vshrl.u32 %v2082, 7
        %v2084 = vsub.s32 0, %v2083
        %v2085 = vrot.slane %v2080, %v2084
        %v2087 = vmul.f32 %v2002, %v2085
        %v2088 = vmul.f32 %v2007, %v2085
        %v2089 = vmul.f32 %v2012, %v2085
        %v2090 = vmul.f32 %v2017, %v2085
        %v2091 = vmul.f32 %v2022, %v2085
        %v2092 = vmul.f32 %v2027, %v2085
        %v2093 = vmul.f32 %v2032, %v2085
        %v2094 = vmul.f32 %v2037, %v2085
        %v2095 = vmul.f32 %v2042, %v2085
        %v2096 = vmul.f32 %v2047, %v2085
        %v2097 = vmul.f32 %v2052, %v2085
        %v2098 = vmul.f32 %v2057, %v2085
        %v2099 = vmul.f32 %v2062, %v2085
        %v2100 = vmul.f32 %v2067, %v2085
        %v2101 = vmul.f32 %v2072, %v2085
        %v2102 = vmul.f32 %v2077, %v2085
        %v2103 = vld [vmem:[%s9] sm:$0x1]
        %v2105 = vlaneseq
        %v2106 = vshrl.u32 %v2105, 7
        %v2107 = vsub.s32 0, %v2106
        %v2108 = vrot.slane %v2103, %v2107
        %v2110 = vadd.f32 %v2087, %v2108
        %v2111 = vadd.f32 %v2088, %v2108
        %v2112 = vadd.f32 %v2089, %v2108
        %v2113 = vadd.f32 %v2090, %v2108
        %v2114 = vadd.f32 %v2091, %v2108
        %v2115 = vadd.f32 %v2092, %v2108
        %v2116 = vadd.f32 %v2093, %v2108
        %v2117 = vadd.f32 %v2094, %v2108
        %v2118 = vadd.f32 %v2095, %v2108
        %v2119 = vadd.f32 %v2096, %v2108
        %v2120 = vadd.f32 %v2097, %v2108
        %v2121 = vadd.f32 %v2098, %v2108
        %v2122 = vadd.f32 %v2099, %v2108
        %v2123 = vadd.f32 %v2100, %v2108
        %v2124 = vadd.f32 %v2101, %v2108
        %v2125 = vadd.f32 %v2102, %v2108
        %v2126 = vmax.f32 %v2110, 0.0
        %v2127 = vmax.f32 %v2111, 0.0
        %v2128 = vmax.f32 %v2112, 0.0
        %v2129 = vmax.f32 %v2113, 0.0
        %v2130 = vmax.f32 %v2114, 0.0
        %v2131 = vmax.f32 %v2115, 0.0
        %v2132 = vmax.f32 %v2116, 0.0
        %v2133 = vmax.f32 %v2117, 0.0
        %v2134 = vmax.f32 %v2118, 0.0
        %v2135 = vmax.f32 %v2119, 0.0
        %v2136 = vmax.f32 %v2120, 0.0
        %v2137 = vmax.f32 %v2121, 0.0
        %v2138 = vmax.f32 %v2122, 0.0
        %v2139 = vmax.f32 %v2123, 0.0
        %v2140 = vmax.f32 %v2124, 0.0
        %v2141 = vmax.f32 %v2125, 0.0
        %v2142 = vld [vmem:[%s5] sm:$0xff]
        %v2144 = vsel %vm576, %v2126, 0
        %v2147 = vsel %vm576, %v2127, 0
        %v2150 = vsel %vm576, %v2128, 0
        %v2153 = vsel %vm576, %v2129, 0
        %v2156 = vsel %vm576, %v2130, 0
        %v2159 = vsel %vm576, %v2131, 0
        %v2162 = vsel %vm576, %v2132, 0
        %v2165 = vsel %vm576, %v2133, 0
        %v2168 = vsel %vm576, %v2134, 0
        %v2171 = vsel %vm576, %v2135, 0
        %v2174 = vsel %vm576, %v2136, 0
        %v2177 = vsel %vm576, %v2137, 0
        %v2180 = vsel %vm576, %v2138, 0
        %v2183 = vsel %vm576, %v2139, 0
        %v2186 = vsel %vm576, %v2140, 0
        %v2189 = vsel %vm576, %v2141, 0
        %2191 = vmatprep.subr.mxu0 0.0
        %2192 = vmatpush1.msra.mxu0 %v2142
        %2193 = vmatprep.subr.mxu0 0.0
        %2194 = vmatpush1.msra.mxu0 0.0
        %2195 = vmatprep.subr.mxu0 0.0
        %2196 = vmatpush1.msra.mxu0 0.0
        %2197 = vmatprep.subr.mxu0 0.0
        %2198 = vmatpush1.msra.mxu0 0.0
        %2199 = vmatprep.subr.mxu0 0.0
        %2200 = vmatpush1.msra.mxu0 0.0
        %2201 = vmatprep.subr.mxu0 0.0
        %2202 = vmatpush1.msra.mxu0 0.0
        %2203 = vmatprep.subr.mxu0 0.0
        %2204 = vmatpush1.msra.mxu0 0.0
        %2205 = vmatprep.subr.mxu0 0.0
        %2206 = vmatpush1.msra.mxu0 0.0
        %2207 = vmatprep.subr.mxu0 0.0
        %2208 = vmatpush1.msra.mxu0 0.0
        %2209 = vmatprep.subr.mxu0 0.0
        %2210 = vmatpush1.msra.mxu0 0.0
        %2211 = vmatprep.subr.mxu0 0.0
        %2212 = vmatpush1.msra.mxu0 0.0
        %2213 = vmatprep.subr.mxu0 0.0
        %2214 = vmatpush1.msra.mxu0 0.0
        %2215 = vmatprep.subr.mxu0 0.0
        %2216 = vmatpush1.msra.mxu0 0.0
        %2217 = vmatprep.subr.mxu0 0.0
        %2218 = vmatpush1.msra.mxu0 0.0
        %2219 = vmatprep.subr.mxu0 0.0
        %2220 = vmatpush1.msra.mxu0 0.0
        %2221 = vmatprep.subr.mxu0 0.0
        %2222 = vmatpush1.msra.mxu0 0.0
        %2223 = vmatprep.subr.mxu0 0.0
        %2224 = vmatpush1.msra.mxu0 0.0
        %2225 = vmatprep.subr.mxu0 0.0
        %2226 = vmatpush1.msra.mxu0 0.0
        %2227 = vmatprep.subr.mxu0 0.0
        %2228 = vmatpush1.msra.mxu0 0.0
        %2229 = vmatprep.subr.mxu0 0.0
        %2230 = vmatpush1.msra.mxu0 0.0
        %2231 = vmatprep.subr.mxu0 0.0
        %2232 = vmatpush1.msra.mxu0 0.0
        %2233 = vmatprep.subr.mxu0 0.0
        %2234 = vmatpush1.msra.mxu0 0.0
        %2235 = vmatprep.subr.mxu0 0.0
        %2236 = vmatpush1.msra.mxu0 0.0
        %2237 = vmatprep.subr.mxu0 0.0
        %2238 = vmatpush1.msra.mxu0 0.0
        %2239 = vmatprep.subr.mxu0 0.0
        %2240 = vmatpush1.msra.mxu0 0.0
        %2241 = vmatprep.subr.mxu0 0.0
        %2242 = vmatpush1.msra.mxu0 0.0
        %2243 = vmatprep.subr.mxu0 0.0
        %2244 = vmatpush1.msra.mxu0 0.0
        %2245 = vmatprep.subr.mxu0 0.0
        %2246 = vmatpush1.msra.mxu0 0.0
        %2247 = vmatprep.subr.mxu0 0.0
        %2248 = vmatpush1.msra.mxu0 0.0
        %2249 = vmatprep.subr.mxu0 0.0
        %2250 = vmatpush1.msra.mxu0 0.0
        %2251 = vmatprep.subr.mxu0 0.0
        %2252 = vmatpush1.msra.mxu0 0.0
        %2253 = vmatprep.subr.mxu0 0.0
        %2254 = vmatpush1.msra.mxu0 0.0
        %2255 = vmatprep.mubr.f32.mxu0 0.0
        %2256 = vmatmul.mubr.f32.gmra.mrb[0].mxu0 %v2144
        %v2257 = vpop.f32.mrb[0].mxu0
        %v2258 = vadd.f32 0.0, %v2257
        %v2259 = vpop.f32.mrb[0].mxu0
        %2260 = vmatprep.mubr.f32.mxu0 0.0
        %2261 = vmatmul.mubr.f32.gmra.mrb[0].mxu0 %v2147
        %v2262 = vpop.f32.mrb[0].mxu0
        %v2263 = vadd.f32 0.0, %v2262
        %v2264 = vpop.f32.mrb[0].mxu0
        %2265 = vmatprep.mubr.f32.mxu0 0.0
        %2266 = vmatmul.mubr.f32.gmra.mrb[0].mxu0 %v2150
        %v2267 = vpop.f32.mrb[0].mxu0
        %v2268 = vadd.f32 0.0, %v2267
        %v2269 = vpop.f32.mrb[0].mxu0
        %2270 = vmatprep.mubr.f32.mxu0 0.0
        %2271 = vmatmul.mubr.f32.gmra.mrb[0].mxu0 %v2153
        %v2272 = vpop.f32.mrb[0].mxu0
        %v2273 = vadd.f32 0.0, %v2272
        %v2274 = vpop.f32.mrb[0].mxu0
        %2275 = vmatprep.mubr.f32.mxu0 0.0
        %2276 = vmatmul.mubr.f32.gmra.mrb[0].mxu0 %v2156
        %v2277 = vpop.f32.mrb[0].mxu0
        %v2278 = vadd.f32 0.0, %v2277
        %v2279 = vpop.f32.mrb[0].mxu0
        %2280 = vmatprep.mubr.f32.mxu0 0.0
        %2281 = vmatmul.mubr.f32.gmra.mrb[0].mxu0 %v2159
        %v2282 = vpop.f32.mrb[0].mxu0
        %v2283 = vadd.f32 0.0, %v2282
        %v2284 = vpop.f32.mrb[0].mxu0
        %2285 = vmatprep.mubr.f32.mxu0 0.0
        %2286 = vmatmul.mubr.f32.gmra.mrb[0].mxu0 %v2162
        %v2287 = vpop.f32.mrb[0].mxu0
        %v2288 = vadd.f32 0.0, %v2287
        %v2289 = vpop.f32.mrb[0].mxu0
        %2290 = vmatprep.mubr.f32.mxu0 0.0
        %2291 = vmatmul.mubr.f32.gmra.mrb[0].mxu0 %v2165
        %v2292 = vpop.f32.mrb[0].mxu0
        %v2293 = vadd.f32 0.0, %v2292
        %v2294 = vpop.f32.mrb[0].mxu0
        %2295 = vmatprep.mubr.f32.mxu0 0.0
        %2296 = vmatmul.mubr.f32.gmra.mrb[0].mxu0 %v2168
        %v2297 = vpop.f32.mrb[0].mxu0
        %v2298 = vadd.f32 0.0, %v2297
        %v2299 = vpop.f32.mrb[0].mxu0
        %2300 = vmatprep.mubr.f32.mxu0 0.0
        %2301 = vmatmul.mubr.f32.gmra.mrb[0].mxu0 %v2171
        %v2302 = vpop.f32.mrb[0].mxu0
        %v2303 = vadd.f32 0.0, %v2302
        %v2304 = vpop.f32.mrb[0].mxu0
        %2305 = vmatprep.mubr.f32.mxu0 0.0
        %2306 = vmatmul.mubr.f32.gmra.mrb[0].mxu0 %v2174
        %v2307 = vpop.f32.mrb[0].mxu0
        %v2308 = vadd.f32 0.0, %v2307
        %v2309 = vpop.f32.mrb[0].mxu0
        %2310 = vmatprep.mubr.f32.mxu0 0.0
        %2311 = vmatmul.mubr.f32.gmra.mrb[0].mxu0 %v2177
        %v2312 = vpop.f32.mrb[0].mxu0
        %v2313 = vadd.f32 0.0, %v2312
        %v2314 = vpop.f32.mrb[0].mxu0
        %2315 = vmatprep.mubr.f32.mxu0 0.0
        %2316 = vmatmul.mubr.f32.gmra.mrb[0].mxu0 %v2180
        %v2317 = vpop.f32.mrb[0].mxu0
        %v2318 = vadd.f32 0.0, %v2317
        %v2319 = vpop.f32.mrb[0].mxu0
        %2320 = vmatprep.mubr.f32.mxu0 0.0
        %2321 = vmatmul.mubr.f32.gmra.mrb[0].mxu0 %v2183
        %v2322 = vpop.f32.mrb[0].mxu0
        %v2323 = vadd.f32 0.0, %v2322
        %v2324 = vpop.f32.mrb[0].mxu0
        %2325 = vmatprep.mubr.f32.mxu0 0.0
        %2326 = vmatmul.mubr.f32.gmra.mrb[0].mxu0 %v2186
        %v2327 = vpop.f32.mrb[0].mxu0
        %v2328 = vadd.f32 0.0, %v2327
        %v2329 = vpop.f32.mrb[0].mxu0
        %2330 = vmatprep.mubr.f32.mxu0 0.0
        %2331 = vmatmul.mubr.f32.gmra.mrb[0].mxu0 %v2189
        %v2332 = vpop.f32.mrb[0].mxu0
        %v2333 = vadd.f32 0.0, %v2332
        %v2334 = vpop.f32.mrb[0].mxu0
        %2335 = vdwg.mxu0
        %v2336 = vld [vmem:[%s10] sm:$0x1]
        %v2338 = vlaneseq
        %v2339 = vshrl.u32 %v2338, 7
        %v2340 = vsub.s32 0, %v2339
        %v2341 = vrot.slane %v2336, %v2340
        %v2343 = vmul.f32 %v2258, %v2341
        %v2344 = vmul.f32 %v2263, %v2341
        %v2345 = vmul.f32 %v2268, %v2341
        %v2346 = vmul.f32 %v2273, %v2341
        %v2347 = vmul.f32 %v2278, %v2341
        %v2348 = vmul.f32 %v2283, %v2341
        %v2349 = vmul.f32 %v2288, %v2341
        %v2350 = vmul.f32 %v2293, %v2341
        %v2351 = vmul.f32 %v2298, %v2341
        %v2352 = vmul.f32 %v2303, %v2341
        %v2353 = vmul.f32 %v2308, %v2341
        %v2354 = vmul.f32 %v2313, %v2341
        %v2355 = vmul.f32 %v2318, %v2341
        %v2356 = vmul.f32 %v2323, %v2341
        %v2357 = vmul.f32 %v2328, %v2341
        %v2358 = vmul.f32 %v2333, %v2341
        %v2359 = vld [vmem:[%s11] sm:$0x1]
        %v2361 = vlaneseq
        %v2362 = vshrl.u32 %v2361, 7
        %v2363 = vsub.s32 0, %v2362
        %v2364 = vrot.slane %v2359, %v2363
        %v2366 = vadd.f32 %v2343, %v2364
        %v2367 = vadd.f32 %v2344, %v2364
        %v2368 = vadd.f32 %v2345, %v2364
        %v2369 = vadd.f32 %v2346, %v2364
        %v2370 = vadd.f32 %v2347, %v2364
        %v2371 = vadd.f32 %v2348, %v2364
        %v2372 = vadd.f32 %v2349, %v2364
        %v2373 = vadd.f32 %v2350, %v2364
        %v2374 = vadd.f32 %v2351, %v2364
        %v2375 = vadd.f32 %v2352, %v2364
        %v2376 = vadd.f32 %v2353, %v2364
        %v2377 = vadd.f32 %v2354, %v2364
        %v2378 = vadd.f32 %v2355, %v2364
        %v2379 = vadd.f32 %v2356, %v2364
        %v2380 = vadd.f32 %v2357, %v2364
        %v2381 = vadd.f32 %v2358, %v2364
        %v2382 = vmax.f32 %v2366, 0.0
        %v2383 = vmax.f32 %v2367, 0.0
        %v2384 = vmax.f32 %v2368, 0.0
        %v2385 = vmax.f32 %v2369, 0.0
        %v2386 = vmax.f32 %v2370, 0.0
        %v2387 = vmax.f32 %v2371, 0.0
        %v2388 = vmax.f32 %v2372, 0.0
        %v2389 = vmax.f32 %v2373, 0.0
        %v2390 = vmax.f32 %v2374, 0.0
        %v2391 = vmax.f32 %v2375, 0.0
        %v2392 = vmax.f32 %v2376, 0.0
        %v2393 = vmax.f32 %v2377, 0.0
        %v2394 = vmax.f32 %v2378, 0.0
        %v2395 = vmax.f32 %v2379, 0.0
        %v2396 = vmax.f32 %v2380, 0.0
        %v2397 = vmax.f32 %v2381, 0.0
        %v2398 = vld [vmem:[%s491] sm:$0xff]
        %v2399 = vld [vmem:[%s491 + $0x8] sm:$0xff]
        %v2400 = vld [vmem:[%s491 + $0x10] sm:$0xff]
        %v2401 = vld [vmem:[%s491 + $0x18] sm:$0xff]
        %v2402 = vld [vmem:[%s491 + $0x20] sm:$0xff]
        %v2403 = vld [vmem:[%s491 + $0x28] sm:$0xff]
        %v2404 = vld [vmem:[%s491 + $0x30] sm:$0xff]
        %v2405 = vld [vmem:[%s491 + $0x38] sm:$0xff]
        %v2406 = vld [vmem:[%s491 + $0x40] sm:$0xff]
        %v2407 = vld [vmem:[%s491 + $0x48] sm:$0xff]
        %v2408 = vld [vmem:[%s491 + $0x50] sm:$0xff]
        %v2409 = vld [vmem:[%s491 + $0x58] sm:$0xff]
        %v2410 = vld [vmem:[%s491 + $0x60] sm:$0xff]
        %v2411 = vld [vmem:[%s491 + $0x68] sm:$0xff]
        %v2412 = vld [vmem:[%s491 + $0x70] sm:$0xff]
        %v2413 = vld [vmem:[%s491 + $0x78] sm:$0xff]
        %v2414 = vadd.f32 %v2382, %v2398
        %v2415 = vadd.f32 %v2383, %v2399
        %v2416 = vadd.f32 %v2384, %v2400
        %v2417 = vadd.f32 %v2385, %v2401
        %v2418 = vadd.f32 %v2386, %v2402
        %v2419 = vadd.f32 %v2387, %v2403
        %v2420 = vadd.f32 %v2388, %v2404
        %v2421 = vadd.f32 %v2389, %v2405
        %v2422 = vadd.f32 %v2390, %v2406
        %v2423 = vadd.f32 %v2391, %v2407
        %v2424 = vadd.f32 %v2392, %v2408
        %v2425 = vadd.f32 %v2393, %v2409
        %v2426 = vadd.f32 %v2394, %v2410
        %v2427 = vadd.f32 %v2395, %v2411
        %v2428 = vadd.f32 %v2396, %v2412
        %v2429 = vadd.f32 %v2397, %v2413
        %2430 = vst.msk [vmem:[%s559] sm:$0xff] %vm624, %v2414
        %2431 = vst.msk [vmem:[%s559 + $0x8] sm:$0xff] %vm624, %v2415
        %2432 = vst.msk [vmem:[%s559 + $0x10] sm:$0xff] %vm624, %v2416
        %2433 = vst.msk [vmem:[%s559 + $0x18] sm:$0xff] %vm624, %v2417
        %2434 = vst.msk [vmem:[%s559 + $0x20] sm:$0xff] %vm624, %v2418
        %2435 = vst.msk [vmem:[%s559 + $0x28] sm:$0xff] %vm624, %v2419
        %2436 = vst.msk [vmem:[%s559 + $0x30] sm:$0xff] %vm624, %v2420
        %2437 = vst.msk [vmem:[%s559 + $0x38] sm:$0xff] %vm624, %v2421
        %2438 = vst.msk [vmem:[%s559 + $0x40] sm:$0xff] %vm624, %v2422
        %2439 = vst.msk [vmem:[%s559 + $0x48] sm:$0xff] %vm624, %v2423
        %2440 = vst.msk [vmem:[%s559 + $0x50] sm:$0xff] %vm624, %v2424
        %2441 = vst.msk [vmem:[%s559 + $0x58] sm:$0xff] %vm624, %v2425
        %2442 = vst.msk [vmem:[%s559 + $0x60] sm:$0xff] %vm624, %v2426
        %2443 = vst.msk [vmem:[%s559 + $0x68] sm:$0xff] %vm624, %v2427
        %2444 = vst.msk [vmem:[%s559 + $0x70] sm:$0xff] %vm624, %v2428
        %2445 = vst.msk [vmem:[%s559 + $0x78] sm:$0xff] %vm624, %v2429
        %s2446 = sand.u32 %s343, 1
        %s2447 = scalar_lea.sflag [#allocation5], %s2446
        %s2448 = sand.u32 %s343, 1
        %s2449 = smul.addr %s2448, 128
        %s2450 = scalar_lea.vmem [#allocation9], %s2449
        // Predicated region
        $region89: #{tpu_custom_call.1} parent=67 // pred_check
          %p2451 = pneg %p353
        $region90: #{tpu_custom_call.1} parent=67 // pred_check_branch
          %2453 = sbr.rel (%p2451) target = $region92
        $region91: #{tpu_custom_call.1} parent=67 // pred_region
          %s2454 = smul.u32 8, %s37
          %s2456 = ssub.s32 2048, 2048
          %2457 = vsyncadd %s2447, %s2456
          %s2458 = smul.addr %s2454, 2
          %s2459 = smul.addr %s36, 32
          %s2460 = sadd.s32 %s2458, %s2459
          %s2461 = smul.addr %s2460, 128
          %s2462 = scalar_lea.hbm %s12, %s2461
          %s2463 = sshll.u32 %s2450, 4
          %s2464 = int_to_ptr.vmem [resolvable:$true] %s2463
          %2469 = dma.vmem_to_hbm [thread:$0]  %s2464, 2048, %s2462, %s2447, 128, 128, 8
        $region92: #{tpu_custom_call.1} parent=67 // pred_fallthru
          _
      $region68: #{tpu_custom_call.1} parent=5 // pred_fallthru
        _
      %p2470 = scmp.le.s32.totalorder 2, %s27
      // Predicated region
      $region93: #{tpu_custom_call.1} parent=5 // pred_check
        %p2471 = pneg %p2470
      $region94: #{tpu_custom_call.1} parent=5 // pred_check_branch
        %2473 = sbr.rel (%p2471) target = $region96
      $region95: #{tpu_custom_call.1} parent=5 // pred_region
        %s2474 = ssub.s32 %s27, 2
        // Predicated region
        $region97: #{tpu_custom_call.1} parent=95 // pred_check
          %p2475 = pneg %p359
        $region98: #{tpu_custom_call.1} parent=95 // pred_check_branch
          %2477 = sbr.rel (%p2475) target = $region100
        $region99: #{tpu_custom_call.1} parent=95 // pred_region
          %s2478 = sand.u32 %s344, 1
          %s2479 = scalar_lea.sflag [#allocation5], %s2478
          %s2480 = sand.u32 %s344, 1
          %s2481 = smul.addr %s2480, 128
          %s2482 = scalar_lea.vmem [#allocation9], %s2481
          %2483 = dma.done %s2479, 2048
        $region100: #{tpu_custom_call.1} parent=95 // pred_fallthru
          _
      $region96: #{tpu_custom_call.1} parent=5 // pred_fallthru
        _
    $region6: #{tpu_custom_call.1} parent=1 // loop_footer
      %s31 = sadd.s32 1, %s27
    $region7: #{tpu_custom_call.1} parent=1 // loop_footer_branch
      %26 = sbr.rel target = $region3
    $region8: #{tpu_custom_call.1} parent=1 // loop_exit
      _
    %2484 = vsyncpa [#allocation4], 1
    %s2485 = scalar_lea.sflag [#allocation4], 1
    %2486 = vsyncpa %s2485, 1
    %2487 = vsyncpa [#allocation7], 1
    %s2488 = scalar_lea.sflag [#allocation7], 1
    %2489 = vsyncpa %s2488, 1
    %2490 = vsyncpa [#allocation5], 1
    %s2491 = scalar_lea.sflag [#allocation5], 1
    %2492 = vsyncpa %s2491, 1

</llo_original>
